<compile_context>
chip_gen: v6e
topology: v6e:2x2x1
jax: 0.10.0
libtpu: 0.0.40
codegen_flags: <defaults>
</compile_context>

<pallas_src>
import functools

import jax
import jax.numpy as jnp
from jax.experimental import pallas as pl
from jax.experimental.pallas import tpu as pltpu

_LEAKY_SLOPE = 0.01            # nn.LeakyReLU() default
_BN_EPS = 1e-5                 # nn.BatchNorm1d default
_VMEM_LIMIT = 32 * 1024 * 1024
_TILE_BUDGET = 24 * 1024 * 1024   # double-buffered per-step VMEM budget for ts


# ----------------------------------------------------------------------------- kernels
def _fc1_stats_kernel(x_ref, w1_ref, h1_ref, s1_ref):
    """h1 = W1 @ x_tile (channels-first, bf16 store); per-batch sum/sumsq."""
    @pl.when(pl.program_id(1) == 0)
    def _():
        s1_ref[...] = jnp.zeros_like(s1_ref)

    x = x_ref[0]                                                       # (C, ts)
    h = jnp.dot(w1_ref[...], x, preferred_element_type=jnp.float32)    # (mid, ts) f32
    h1_ref[0] = h.astype(h1_ref.dtype)                                 # bf16 store
    # Stats from the f32 result (pre-rounding).  Padded x columns are zero and
    # fc1's bias is folded into bn1, so pad columns contribute exactly 0 here.
    s1_ref[0] += jnp.concatenate(
        [jnp.sum(h, axis=1, keepdims=True),
         jnp.sum(h * h, axis=1, keepdims=True)], axis=1)               # (mid, 2)


def _bn1_fc2_stats_kernel(m_total, s_valid, ts, h1_ref, s1_ref, g1_ref, be1_ref,
                          w2_ref, h2_ref, s2_ref):
    """bn1 (batch stats) -> LeakyReLU -> h2 = W2 @ .; per-batch h2 stats."""
    @pl.when(pl.program_id(1) == 0)
    def _():
        s2_ref[...] = jnp.zeros_like(s2_ref)

    inv_m = 1.0 / m_total
    mean = s1_ref[:, 0:1] * inv_m                                      # (mid, 1)
    var = jnp.maximum(s1_ref[:, 1:2] * inv_m - mean * mean, 0.0)       # biased var
    h = h1_ref[0].astype(jnp.float32)                                  # (mid, ts)
    h = (h - mean) * jax.lax.rsqrt(var + _BN_EPS) * g1_ref[...] + be1_ref[...]
    h = jnp.where(h >= 0, h, _LEAKY_SLOPE * h)
    h2 = jnp.dot(w2_ref[...], h, preferred_element_type=jnp.float32)   # (last, ts)
    h2_ref[0] = h2.astype(h2_ref.dtype)                                # bf16 store
    if s_valid is not None:   # S was padded: pad columns are nonzero after bn1
        col = pl.program_id(1) * ts + jax.lax.broadcasted_iota(jnp.int32, (1, ts), 1)
        h2 = jnp.where(col < s_valid, h2, 0.0)
    s2_ref[0] += jnp.concatenate(
        [jnp.sum(h2, axis=1, keepdims=True),
         jnp.sum(h2 * h2, axis=1, keepdims=True)], axis=1)             # (last, 2)


def _bn2_fc3_kernel(m_total, h2_ref, s2_ref, g2_ref, be2_ref, w3_ref, b3_ref,
                    o_ref):
    """bn2 (batch stats) -> LeakyReLU -> fc3 (+bias) -> sigmoid."""
    inv_m = 1.0 / m_total
    mean = s2_ref[:, 0:1] * inv_m                                      # (last, 1)
    var = jnp.maximum(s2_ref[:, 1:2] * inv_m - mean * mean, 0.0)
    h = h2_ref[0].astype(jnp.float32)                                  # (last, ts)
    h = (h - mean) * jax.lax.rsqrt(var + _BN_EPS) * g2_ref[...] + be2_ref[...]
    h = jnp.where(h >= 0, h, _LEAKY_SLOPE * h)
    y = jnp.dot(w3_ref[...], h, preferred_element_type=jnp.float32) + b3_ref[...]
    o_ref[0] = jax.nn.sigmoid(y)                                       # (out, ts)


# ----------------------------------------------------------------------------- params
def init_params(key, in_channels, out_class):
    mid = in_channels // 4
    last = mid // 4
    k1, k2, k3 = jax.random.split(key, 3)

    def linear(k, fan_in, fan_out, with_bias):
        kw, kb = jax.random.split(k)
        bound = 1.0 / (fan_in ** 0.5)
        # PyTorch layout: (out_features, in_features)
        w = jax.random.uniform(kw, (fan_out, fan_in), jnp.float32, -bound, bound)
        if not with_bias:
            return w, None
        b = jax.random.uniform(kb, (fan_out, 1), jnp.float32, -bound, bound)
        return w, b

    # fc1 / fc2 biases are exactly cancelled by the batch-stat BN mean
    # subtraction -> not created / not passed to the kernels.
    w1, _ = linear(k1, in_channels, mid, with_bias=False)
    w2, _ = linear(k2, mid, last, with_bias=False)
    w3, b3 = linear(k3, last, out_class, with_bias=True)
    return dict(
        w1=w1, w2=w2, w3=w3, b3=b3,
        g1=jnp.ones((mid, 1), jnp.float32), be1=jnp.zeros((mid, 1), jnp.float32),
        g2=jnp.ones((last, 1), jnp.float32), be2=jnp.zeros((last, 1), jnp.float32))


def _pick_s_tile(S, bytes_per_col):
    """Largest S tile (prefer 2048) that fits the VMEM budget and divides S.

    Returns (tile, padded_S).  If S is not divisible by any candidate, S is
    padded up to a multiple of the chosen tile so every block is lane-dense.
    """
    cands = [t for t in (2048, 1024, 512, 256, 128)
             if 2 * t * bytes_per_col <= _TILE_BUDGET] or [128]
    for ts in cands:
        if S % ts == 0:
            return ts, S
    ts = next((t for t in cands if t <= S), cands[-1])
    s_pad = ((S + ts - 1) // ts) * ts
    return ts, s_pad


# ----------------------------------------------------------------------------- forward
def mlp_3layer_forward(x, params):
    B, C, H, W = x.shape
    S = H * W
    M = B * S                              # true sample count for BN statistics
    mid = params["w1"].shape[0]
    last = params["w2"].shape[0]
    out_class = params["w3"].shape[0]

    # Per-column VMEM footprint of the heaviest stage (A): x tile + bf16 h1 tile.
    bytes_per_col = C * x.dtype.itemsize + mid * 2
    ts, s_pad = _pick_s_tile(S, bytes_per_col)
    grid = (B, s_pad // ts)

    x3 = x.reshape(B, C, S)                # free reshape; NO transpose of x
    if s_pad != S:
        x3 = jnp.pad(x3, ((0, 0), (0, 0), (0, s_pad - S)))
    w1 = params["w1"].astype(x.dtype)      # tiny; a bf16 x takes the bf16 MXU path

    cp_acc = pltpu.CompilerParams(         # per-batch stats partials => batch parallel
        dimension_semantics=("parallel", "arbitrary"),
        vmem_limit_bytes=_VMEM_LIMIT)
    cp_par = pltpu.CompilerParams(         # stage C is fully tile-independent
        dimension_semantics=("parallel", "parallel"),
        vmem_limit_bytes=_VMEM_LIMIT)

    # ---- stage A: fc1 + per-batch h1 statistics -----------------------------
    h1, s1 = pl.pallas_call(
        _fc1_stats_kernel,
        out_shape=(jax.ShapeDtypeStruct((B, mid, s_pad), jnp.bfloat16),
                   jax.ShapeDtypeStruct((B, mid, 2), jnp.float32)),
        grid_spec=pltpu.PrefetchScalarGridSpec(
            num_scalar_prefetch=0,
            grid=grid,
            in_specs=[pl.BlockSpec((1, C, ts), lambda b, s: (b, 0, s)),
                      pl.BlockSpec((mid, C), lambda b, s: (0, 0))],
            out_specs=(pl.BlockSpec((1, mid, ts), lambda b, s: (b, 0, s)),
                       pl.BlockSpec((1, mid, 2), lambda b, s: (b, 0, 0)))),
        compiler_params=cp_acc,
        cost_estimate=pl.CostEstimate(
            flops=int(2 * B * s_pad * C * mid + 3 * B * s_pad * mid),
            transcendentals=0,
            bytes_accessed=int(x3.size * x3.dtype.itemsize
                               + w1.size * w1.dtype.itemsize
                               + B * s_pad * mid * 2 + B * mid * 2 * 4)),
    )(x3, w1)
    s1_tot = jnp.sum(s1, axis=0)           # (mid, 2) full-batch sums

    # ---- stage B: bn1 + LeakyReLU + fc2 + per-batch h2 statistics -----------
    s_valid = S if s_pad != S else None    # static: mask pad cols out of stats
    h2, s2 = pl.pallas_call(
        functools.partial(_bn1_fc2_stats_kernel, float(M), s_valid, ts),
        out_shape=(jax.ShapeDtypeStruct((B, last, s_pad), jnp.bfloat16),
                   jax.ShapeDtypeStruct((B, last, 2), jnp.float32)),
        grid_spec=pltpu.PrefetchScalarGridSpec(
            num_scalar_prefetch=0,
            grid=grid,
            in_specs=[pl.BlockSpec((1, mid, ts), lambda b, s: (b, 0, s)),
                      pl.BlockSpec((mid, 2), lambda b, s: (0, 0)),
                      pl.BlockSpec((mid, 1), lambda b, s: (0, 0)),
                      pl.BlockSpec((mid, 1), lambda b, s: (0, 0)),
                      pl.BlockSpec((last, mid), lambda b, s: (0, 0))],
            out_specs=(pl.BlockSpec((1, last, ts), lambda b, s: (b, 0, s)),
                       pl.BlockSpec((1, last, 2), lambda b, s: (b, 0, 0)))),
        compiler_params=cp_acc,
        cost_estimate=pl.CostEstimate(
            flops=int(2 * B * s_pad * mid * last + 9 * B * s_pad * mid),
            transcendentals=int(mid),
            bytes_accessed=int(B * s_pad * (mid + last) * 2
                               + (mid * 4 + last * 4 + last * mid) * 4)),
    )(h1, s1_tot, params["g1"], params["be1"], params["w2"])
    s2_tot = jnp.sum(s2, axis=0)           # (last, 2) full-batch sums

    # ---- stage C: bn2 + LeakyReLU + fc3 + sigmoid (lane-dense output) -------
    y_cf = pl.pallas_call(
        functools.partial(_bn2_fc3_kernel, float(M)),
        out_shape=jax.ShapeDtypeStruct((B, out_class, s_pad), jnp.float32),
        grid_spec=pltpu.PrefetchScalarGridSpec(
            num_scalar_prefetch=0,
            grid=grid,
            in_specs=[pl.BlockSpec((1, last, ts), lambda b, s: (b, 0, s)),
                      pl.BlockSpec((last, 2), lambda b, s: (0, 0)),
                      pl.BlockSpec((last, 1), lambda b, s: (0, 0)),
                      pl.BlockSpec((last, 1), lambda b, s: (0, 0)),
                      pl.BlockSpec((out_class, last), lambda b, s: (0, 0)),
                      pl.BlockSpec((out_class, 1), lambda b, s: (0, 0))],
            out_specs=pl.BlockSpec((1, out_class, ts), lambda b, s: (b, 0, s))),
        compiler_params=cp_par,
        cost_estimate=pl.CostEstimate(
            flops=int(2 * B * s_pad * last * out_class + 9 * B * s_pad * last),
            transcendentals=int(B * s_pad * out_class),
            bytes_accessed=int(B * s_pad * last * 2 + B * s_pad * out_class * 4)),
    )(h2, s2_tot, params["g2"], params["be2"], params["w3"], params["b3"])

    if s_pad != S:
        y_cf = y_cf[:, :, :S]
    # Tiny (B, out_class, S) -> PyTorch (B, S, out_class); negligible traffic
    # compared with the removed (B, S, C) input transpose.
    return jnp.transpose(y_cf, (0, 2, 1))


# ----------------------------------------------------------------------------- demo
if __name__ == "__main__":
    IN_CHANNELS = 128      # mid = 32, last = 8
    OUT_CLASS = 2
    B, H, W = 2, 16, 16    # S = 256 -> s-tile 256, grid (2, 1), M = 512

    key = jax.random.PRNGKey(0)
    kx, kp = jax.random.split(key)
    x = jax.random.normal(kx, (B, IN_CHANNELS, H, W), dtype=jnp.float32)
    params = init_params(kp, IN_CHANNELS, OUT_CLASS)

    fwd = jax.jit(mlp_3layer_forward)
    y = fwd(x, params)
    jax.block_until_ready(y)

    assert y.shape == (B, H * W, OUT_CLASS)
    assert bool(jnp.all(jnp.isfinite(y))) and bool(jnp.all((y >= 0) & (y <= 1)))
    print("KERNEL_OK")
</pallas_src>

<mosaic_0001>
module attributes {stable_mosaic.version = 11 : i64} {
  func.func @_fc1_stats_kernel(%arg0: i32, %arg1: i32, %arg2: memref<1x128x256xf32, #tpu.memory_space<vmem>>, %arg3: memref<32x128xf32, #tpu.memory_space<vmem>>, %arg4: memref<1x32x256xbf16, #tpu.memory_space<vmem>>, %arg5: memref<1x32x2xf32, #tpu.memory_space<vmem>>) attributes {dimension_semantics = [#tpu.dimension_semantics<parallel>, #tpu.dimension_semantics<arbitrary>], iteration_bounds = array<i64: 2, 1>, scalar_prefetch = 0 : i64, scratch_operands = 0 : i64, tpu.core_type = #tpu.core_type<tc>, window_params = [{transform_indices = @transform_0, window_bounds = array<i64: 1, 128, 256>}, {pipeline_mode = #tpu.pipeline_mode<synchronous>, transform_indices = @transform_1, window_bounds = array<i64: 32, 128>}, {transform_indices = @transform_2, window_bounds = array<i64: 1, 32, 256>}, {transform_indices = @transform_3, window_bounds = array<i64: 1, 32, 2>}]} {
    %c0_i32 = arith.constant 0 : i32
    %0 = arith.cmpi eq, %arg1, %c0_i32 : i32
    %1 = arith.extui %0 : i1 to i32
    %c0_i32_0 = arith.constant 0 : i32
    %2 = arith.cmpi ne, %1, %c0_i32_0 : i32
    scf.if %2 {
      %cst_16 = arith.constant 0.000000e+00 : f32
      %23 = vector.broadcast %cst_16 : f32 to vector<1x32x2xf32>
      %c0_17 = arith.constant 0 : index
      %c0_18 = arith.constant 0 : index
      %c0_19 = arith.constant 0 : index
      %24 = vector.load %arg5[%c0_17, %c0_18, %c0_19] : memref<1x32x2xf32, #tpu.memory_space<vmem>>, vector<1x32x2xf32>
      tpu.vector_store %arg5[%c0_17, %c0_18, %c0_19], %23 {strides = array<i32>} : memref<1x32x2xf32, #tpu.memory_space<vmem>>, vector<1x32x2xf32>,
    } else {
    }
    %c0 = arith.constant 0 : index
    %c0_1 = arith.constant 0 : index
    %c0_2 = arith.constant 0 : index
    %3 = vector.load %arg2[%c0, %c0_1, %c0_2] : memref<1x128x256xf32, #tpu.memory_space<vmem>>, vector<1x128x256xf32>
    %4 = vector.shape_cast %3 : vector<1x128x256xf32> to vector<128x256xf32>
    %c0_3 = arith.constant 0 : index
    %c0_4 = arith.constant 0 : index
    %5 = vector.load %arg3[%c0_3, %c0_4] : memref<32x128xf32, #tpu.memory_space<vmem>>, vector<32x128xf32>
    %cst = arith.constant dense<0.000000e+00> : vector<32x256xf32>
    %6 = tpu.matmul %5, %4, %cst {dimension_numbers = #tpu.dot_dimension_numbers<[1], [0], [0], [1], [0, 0, 1, 1], [], []>} : vector<32x128xf32>, vector<128x256xf32>, vector<32x256xf32> -> vector<32x256xf32>
    %7 = arith.truncf %6 : vector<32x256xf32> to vector<32x256xbf16>
    %c0_5 = arith.constant 0 : index
    %c0_6 = arith.constant 0 : index
    %c0_7 = arith.constant 0 : index
    %8 = vector.load %arg4[%c0_5, %c0_6, %c0_7] : memref<1x32x256xbf16, #tpu.memory_space<vmem>>, vector<1x32x256xbf16>
    %9 = vector.shape_cast %8 : vector<1x32x256xbf16> to vector<32x256xbf16>
    %10 = vector.shape_cast %7 : vector<32x256xbf16> to vector<1x32x256xbf16>
    tpu.vector_store %arg4[%c0_5, %c0_6, %c0_7], %10 {strides = array<i32>} : memref<1x32x256xbf16, #tpu.memory_space<vmem>>, vector<1x32x256xbf16>,
    %c0_8 = arith.constant 0 : index
    %c0_9 = arith.constant 0 : index
    %c0_10 = arith.constant 0 : index
    %11 = vector.load %arg5[%c0_8, %c0_9, %c0_10] : memref<1x32x2xf32, #tpu.memory_space<vmem>>, vector<1x32x2xf32>
    %12 = vector.shape_cast %11 : vector<1x32x2xf32> to vector<32x2xf32>
    %cst_11 = arith.constant dense<0.000000e+00> : vector<32xf32>
    %13 = vector.multi_reduction <add>, %6, %cst_11 [1] : vector<32x256xf32> to vector<32xf32>
    %14 = vector.shape_cast %13 : vector<32xf32> to vector<32x1xf32>
    %15 = arith.mulf %6, %6 : vector<32x256xf32>
    %cst_12 = arith.constant dense<0.000000e+00> : vector<32xf32>
    %16 = vector.multi_reduction <add>, %15, %cst_12 [1] : vector<32x256xf32> to vector<32xf32>
    %17 = vector.shape_cast %16 : vector<32xf32> to vector<32x1xf32>
    %18 = tpu.concatenate %14, %17 in 1 : vector<32x1xf32>, vector<32x1xf32> -> vector<32x2xf32>
    %19 = arith.addf %12, %18 : vector<32x2xf32>
    %c0_13 = arith.constant 0 : index
    %c0_14 = arith.constant 0 : index
    %c0_15 = arith.constant 0 : index
    %20 = vector.load %arg5[%c0_13, %c0_14, %c0_15] : memref<1x32x2xf32, #tpu.memory_space<vmem>>, vector<1x32x2xf32>
    %21 = vector.shape_cast %20 : vector<1x32x2xf32> to vector<32x2xf32>
    %22 = vector.shape_cast %19 : vector<32x2xf32> to vector<1x32x2xf32>
    tpu.vector_store %arg5[%c0_13, %c0_14, %c0_15], %22 {strides = array<i32>} : memref<1x32x2xf32, #tpu.memory_space<vmem>>, vector<1x32x2xf32>,
    return
  }
  func.func @transform_0(%arg0: i32, %arg1: i32) -> (i32, i32, i32) {
    %c0_i32 = arith.constant 0 : i32
    %c0_i32_0 = arith.constant 0 : i32
    return %arg0, %c0_i32, %arg1 : i32, i32, i32
  }
  func.func @transform_1(%arg0: i32, %arg1: i32) -> (i32, i32) {
    %c0_i32 = arith.constant 0 : i32
    %c0_i32_0 = arith.constant 0 : i32
    %c0_i32_1 = arith.constant 0 : i32
    return %c0_i32, %c0_i32_0 : i32, i32
  }
  func.func @transform_2(%arg0: i32, %arg1: i32) -> (i32, i32, i32) {
    %c0_i32 = arith.constant 0 : i32
    %c0_i32_0 = arith.constant 0 : i32
    return %arg0, %c0_i32, %arg1 : i32, i32, i32
  }
  func.func @transform_3(%arg0: i32, %arg1: i32) -> (i32, i32, i32) {
    %c0_i32 = arith.constant 0 : i32
    %c0_i32_0 = arith.constant 0 : i32
    %c0_i32_1 = arith.constant 0 : i32
    return %arg0, %c0_i32, %c0_i32_0 : i32, i32, i32
  }
}

module attributes {stable_mosaic.version = 11 : i64} {
  func.func @_bn1_fc2_stats_kernel(%arg0: i32, %arg1: i32, %arg2: memref<1x32x256xbf16, #tpu.memory_space<vmem>>, %arg3: memref<32x2xf32, #tpu.memory_space<vmem>>, %arg4: memref<32x1xf32, #tpu.memory_space<vmem>>, %arg5: memref<32x1xf32, #tpu.memory_space<vmem>>, %arg6: memref<8x32xf32, #tpu.memory_space<vmem>>, %arg7: memref<1x8x256xbf16, #tpu.memory_space<vmem>>, %arg8: memref<1x8x2xf32, #tpu.memory_space<vmem>>) attributes {dimension_semantics = [#tpu.dimension_semantics<parallel>, #tpu.dimension_semantics<arbitrary>], iteration_bounds = array<i64: 2, 1>, scalar_prefetch = 0 : i64, scratch_operands = 0 : i64, tpu.core_type = #tpu.core_type<tc>, window_params = [{transform_indices = @transform_0, window_bounds = array<i64: 1, 32, 256>}, {pipeline_mode = #tpu.pipeline_mode<synchronous>, transform_indices = @transform_1, window_bounds = array<i64: 32, 2>}, {pipeline_mode = #tpu.pipeline_mode<synchronous>, transform_indices = @transform_2, window_bounds = array<i64: 32, 1>}, {pipeline_mode = #tpu.pipeline_mode<synchronous>, transform_indices = @transform_3, window_bounds = array<i64: 32, 1>}, {pipeline_mode = #tpu.pipeline_mode<synchronous>, transform_indices = @transform_4, window_bounds = array<i64: 8, 32>}, {transform_indices = @transform_5, window_bounds = array<i64: 1, 8, 256>}, {transform_indices = @transform_6, window_bounds = array<i64: 1, 8, 2>}]} {
    %c0_i32 = arith.constant 0 : i32
    %0 = arith.cmpi eq, %arg1, %c0_i32 : i32
    %1 = arith.extui %0 : i1 to i32
    %c0_i32_0 = arith.constant 0 : i32
    %2 = arith.cmpi ne, %1, %c0_i32_0 : i32
    scf.if %2 {
      %cst_29 = arith.constant 0.000000e+00 : f32
      %52 = vector.broadcast %cst_29 : f32 to vector<1x8x2xf32>
      %c0_30 = arith.constant 0 : index
      %c0_31 = arith.constant 0 : index
      %c0_32 = arith.constant 0 : index
      %53 = vector.load %arg8[%c0_30, %c0_31, %c0_32] : memref<1x8x2xf32, #tpu.memory_space<vmem>>, vector<1x8x2xf32>
      tpu.vector_store %arg8[%c0_30, %c0_31, %c0_32], %52 {strides = array<i32>} : memref<1x8x2xf32, #tpu.memory_space<vmem>>, vector<1x8x2xf32>,
    } else {
    }
    %c0 = arith.constant 0 : index
    %c0_1 = arith.constant 0 : index
    %3 = vector.load %arg3[%c0, %c0_1] : memref<32x2xf32, #tpu.memory_space<vmem>>, vector<32x1xf32>
    %cst = arith.constant 0.001953125 : f32
    %4 = vector.broadcast %cst : f32 to vector<32x1xf32>
    %5 = arith.mulf %3, %4 : vector<32x1xf32>
    %c0_2 = arith.constant 0 : index
    %c1 = arith.constant 1 : index
    %6 = vector.load %arg3[%c0_2, %c1] : memref<32x2xf32, #tpu.memory_space<vmem>>, vector<32x1xf32>
    %cst_3 = arith.constant 0.001953125 : f32
    %7 = vector.broadcast %cst_3 : f32 to vector<32x1xf32>
    %8 = arith.mulf %6, %7 : vector<32x1xf32>
    %9 = arith.mulf %5, %5 : vector<32x1xf32>
    %10 = arith.subf %8, %9 : vector<32x1xf32>
    %cst_4 = arith.constant 0.000000e+00 : f32
    %11 = vector.broadcast %cst_4 : f32 to vector<32x1xf32>
    %12 = arith.maximumf %10, %11 : vector<32x1xf32>
    %c0_5 = arith.constant 0 : index
    %c0_6 = arith.constant 0 : index
    %c0_7 = arith.constant 0 : index
    %13 = vector.load %arg2[%c0_5, %c0_6, %c0_7] : memref<1x32x256xbf16, #tpu.memory_space<vmem>>, vector<1x32x256xbf16>
    %14 = vector.shape_cast %13 : vector<1x32x256xbf16> to vector<32x256xbf16>
    %15 = arith.extf %14 : vector<32x256xbf16> to vector<32x256xf32>
    %16 = vector.broadcast %5 : vector<32x1xf32> to vector<32x256xf32>
    %17 = arith.subf %15, %16 : vector<32x256xf32>
    %cst_8 = arith.constant 9.99999974E-6 : f32
    %18 = vector.broadcast %cst_8 : f32 to vector<32x1xf32>
    %19 = arith.addf %12, %18 : vector<32x1xf32>
    %20 = math.rsqrt %19 : vector<32x1xf32>
    %21 = vector.broadcast %20 : vector<32x1xf32> to vector<32x256xf32>
    %22 = arith.mulf %17, %21 : vector<32x256xf32>
    %c0_9 = arith.constant 0 : index
    %c0_10 = arith.constant 0 : index
    %23 = vector.load %arg4[%c0_9, %c0_10] : memref<32x1xf32, #tpu.memory_space<vmem>>, vector<32x1xf32>
    %24 = vector.broadcast %23 : vector<32x1xf32> to vector<32x256xf32>
    %25 = arith.mulf %22, %24 : vector<32x256xf32>
    %c0_11 = arith.constant 0 : index
    %c0_12 = arith.constant 0 : index
    %26 = vector.load %arg5[%c0_11, %c0_12] : memref<32x1xf32, #tpu.memory_space<vmem>>, vector<32x1xf32>
    %27 = vector.broadcast %26 : vector<32x1xf32> to vector<32x256xf32>
    %28 = arith.addf %25, %27 : vector<32x256xf32>
    %cst_13 = arith.constant 0.000000e+00 : f32
    %29 = vector.broadcast %cst_13 : f32 to vector<32x256xf32>
    %30 = arith.cmpf oge, %28, %29 : vector<32x256xf32>
    %cst_14 = arith.constant 0.00999999977 : f32
    %31 = vector.broadcast %cst_14 : f32 to vector<32x256xf32>
    %32 = arith.mulf %31, %28 : vector<32x256xf32>
    %33 = arith.select %30, %28, %32 : vector<32x256xi1>, vector<32x256xf32>
    %c0_15 = arith.constant 0 : index
    %c0_16 = arith.constant 0 : index
    %34 = vector.load %arg6[%c0_15, %c0_16] : memref<8x32xf32, #tpu.memory_space<vmem>>, vector<8x32xf32>
    %cst_17 = arith.constant dense<0.000000e+00> : vector<8x256xf32>
    %35 = tpu.matmul %34, %33, %cst_17 {dimension_numbers = #tpu.dot_dimension_numbers<[1], [0], [0], [1], [0, 0, 1, 1], [], []>} : vector<8x32xf32>, vector<32x256xf32>, vector<8x256xf32> -> vector<8x256xf32>
    %36 = arith.truncf %35 : vector<8x256xf32> to vector<8x256xbf16>
    %c0_18 = arith.constant 0 : index
    %c0_19 = arith.constant 0 : index
    %c0_20 = arith.constant 0 : index
    %37 = vector.load %arg7[%c0_18, %c0_19, %c0_20] : memref<1x8x256xbf16, #tpu.memory_space<vmem>>, vector<1x8x256xbf16>
    %38 = vector.shape_cast %37 : vector<1x8x256xbf16> to vector<8x256xbf16>
    %39 = vector.shape_cast %36 : vector<8x256xbf16> to vector<1x8x256xbf16>
    tpu.vector_store %arg7[%c0_18, %c0_19, %c0_20], %39 {strides = array<i32>} : memref<1x8x256xbf16, #tpu.memory_space<vmem>>, vector<1x8x256xbf16>,
    %c0_21 = arith.constant 0 : index
    %c0_22 = arith.constant 0 : index
    %c0_23 = arith.constant 0 : index
    %40 = vector.load %arg8[%c0_21, %c0_22, %c0_23] : memref<1x8x2xf32, #tpu.memory_space<vmem>>, vector<1x8x2xf32>
    %41 = vector.shape_cast %40 : vector<1x8x2xf32> to vector<8x2xf32>
    %cst_24 = arith.constant dense<0.000000e+00> : vector<8xf32>
    %42 = vector.multi_reduction <add>, %35, %cst_24 [1] : vector<8x256xf32> to vector<8xf32>
    %43 = vector.shape_cast %42 : vector<8xf32> to vector<8x1xf32>
    %44 = arith.mulf %35, %35 : vector<8x256xf32>
    %cst_25 = arith.constant dense<0.000000e+00> : vector<8xf32>
    %45 = vector.multi_reduction <add>, %44, %cst_25 [1] : vector<8x256xf32> to vector<8xf32>
    %46 = vector.shape_cast %45 : vector<8xf32> to vector<8x1xf32>
    %47 = tpu.concatenate %43, %46 in 1 : vector<8x1xf32>, vector<8x1xf32> -> vector<8x2xf32>
    %48 = arith.addf %41, %47 : vector<8x2xf32>
    %c0_26 = arith.constant 0 : index
    %c0_27 = arith.constant 0 : index
    %c0_28 = arith.constant 0 : index
    %49 = vector.load %arg8[%c0_26, %c0_27, %c0_28] : memref<1x8x2xf32, #tpu.memory_space<vmem>>, vector<1x8x2xf32>
    %50 = vector.shape_cast %49 : vector<1x8x2xf32> to vector<8x2xf32>
    %51 = vector.shape_cast %48 : vector<8x2xf32> to vector<1x8x2xf32>
    tpu.vector_store %arg8[%c0_26, %c0_27, %c0_28], %51 {strides = array<i32>} : memref<1x8x2xf32, #tpu.memory_space<vmem>>, vector<1x8x2xf32>,
    return
  }
  func.func @transform_0(%arg0: i32, %arg1: i32) -> (i32, i32, i32) {
    %c0_i32 = arith.constant 0 : i32
    %c0_i32_0 = arith.constant 0 : i32
    return %arg0, %c0_i32, %arg1 : i32, i32, i32
  }
  func.func @transform_1(%arg0: i32, %arg1: i32) -> (i32, i32) {
    %c0_i32 = arith.constant 0 : i32
    %c0_i32_0 = arith.constant 0 : i32
    %c0_i32_1 = arith.constant 0 : i32
    return %c0_i32, %c0_i32_0 : i32, i32
  }
  func.func @transform_2(%arg0: i32, %arg1: i32) -> (i32, i32) {
    %c0_i32 = arith.constant 0 : i32
    %c0_i32_0 = arith.constant 0 : i32
    %c0_i32_1 = arith.constant 0 : i32
    return %c0_i32, %c0_i32_0 : i32, i32
  }
  func.func @transform_3(%arg0: i32, %arg1: i32) -> (i32, i32) {
    %c0_i32 = arith.constant 0 : i32
    %c0_i32_0 = arith.constant 0 : i32
    %c0_i32_1 = arith.constant 0 : i32
    return %c0_i32, %c0_i32_0 : i32, i32
  }
  func.func @transform_4(%arg0: i32, %arg1: i32) -> (i32, i32) {
    %c0_i32 = arith.constant 0 : i32
    %c0_i32_0 = arith.constant 0 : i32
    %c0_i32_1 = arith.constant 0 : i32
    return %c0_i32, %c0_i32_0 : i32, i32
  }
  func.func @transform_5(%arg0: i32, %arg1: i32) -> (i32, i32, i32) {
    %c0_i32 = arith.constant 0 : i32
    %c0_i32_0 = arith.constant 0 : i32
    return %arg0, %c0_i32, %arg1 : i32, i32, i32
  }
  func.func @transform_6(%arg0: i32, %arg1: i32) -> (i32, i32, i32) {
    %c0_i32 = arith.constant 0 : i32
    %c0_i32_0 = arith.constant 0 : i32
    %c0_i32_1 = arith.constant 0 : i32
    return %arg0, %c0_i32, %c0_i32_0 : i32, i32, i32
  }
}

module attributes {stable_mosaic.version = 11 : i64} {
  func.func @_bn2_fc3_kernel(%arg0: i32, %arg1: i32, %arg2: memref<1x8x256xbf16, #tpu.memory_space<vmem>>, %arg3: memref<8x2xf32, #tpu.memory_space<vmem>>, %arg4: memref<8x1xf32, #tpu.memory_space<vmem>>, %arg5: memref<8x1xf32, #tpu.memory_space<vmem>>, %arg6: memref<2x8xf32, #tpu.memory_space<vmem>>, %arg7: memref<2x1xf32, #tpu.memory_space<vmem>>, %arg8: memref<1x2x256xf32, #tpu.memory_space<vmem>>) attributes {dimension_semantics = [#tpu.dimension_semantics<parallel>, #tpu.dimension_semantics<parallel>], iteration_bounds = array<i64: 2, 1>, scalar_prefetch = 0 : i64, scratch_operands = 0 : i64, tpu.core_type = #tpu.core_type<tc>, window_params = [{transform_indices = @transform_0, window_bounds = array<i64: 1, 8, 256>}, {pipeline_mode = #tpu.pipeline_mode<synchronous>, transform_indices = @transform_1, window_bounds = array<i64: 8, 2>}, {pipeline_mode = #tpu.pipeline_mode<synchronous>, transform_indices = @transform_2, window_bounds = array<i64: 8, 1>}, {pipeline_mode = #tpu.pipeline_mode<synchronous>, transform_indices = @transform_3, window_bounds = array<i64: 8, 1>}, {pipeline_mode = #tpu.pipeline_mode<synchronous>, transform_indices = @transform_4, window_bounds = array<i64: 2, 8>}, {pipeline_mode = #tpu.pipeline_mode<synchronous>, transform_indices = @transform_5, window_bounds = array<i64: 2, 1>}, {transform_indices = @transform_6, window_bounds = array<i64: 1, 2, 256>}]} {
    %c0 = arith.constant 0 : index
    %c0_0 = arith.constant 0 : index
    %0 = vector.load %arg3[%c0, %c0_0] : memref<8x2xf32, #tpu.memory_space<vmem>>, vector<8x1xf32>
    %cst = arith.constant 0.001953125 : f32
    %1 = vector.broadcast %cst : f32 to vector<8x1xf32>
    %2 = arith.mulf %0, %1 : vector<8x1xf32>
    %c0_1 = arith.constant 0 : index
    %c1 = arith.constant 1 : index
    %3 = vector.load %arg3[%c0_1, %c1] : memref<8x2xf32, #tpu.memory_space<vmem>>, vector<8x1xf32>
    %cst_2 = arith.constant 0.001953125 : f32
    %4 = vector.broadcast %cst_2 : f32 to vector<8x1xf32>
    %5 = arith.mulf %3, %4 : vector<8x1xf32>
    %6 = arith.mulf %2, %2 : vector<8x1xf32>
    %7 = arith.subf %5, %6 : vector<8x1xf32>
    %cst_3 = arith.constant 0.000000e+00 : f32
    %8 = vector.broadcast %cst_3 : f32 to vector<8x1xf32>
    %9 = arith.maximumf %7, %8 : vector<8x1xf32>
    %c0_4 = arith.constant 0 : index
    %c0_5 = arith.constant 0 : index
    %c0_6 = arith.constant 0 : index
    %10 = vector.load %arg2[%c0_4, %c0_5, %c0_6] : memref<1x8x256xbf16, #tpu.memory_space<vmem>>, vector<1x8x256xbf16>
    %11 = vector.shape_cast %10 : vector<1x8x256xbf16> to vector<8x256xbf16>
    %12 = arith.extf %11 : vector<8x256xbf16> to vector<8x256xf32>
    %13 = vector.broadcast %2 : vector<8x1xf32> to vector<8x256xf32>
    %14 = arith.subf %12, %13 : vector<8x256xf32>
    %cst_7 = arith.constant 9.99999974E-6 : f32
    %15 = vector.broadcast %cst_7 : f32 to vector<8x1xf32>
    %16 = arith.addf %9, %15 : vector<8x1xf32>
    %17 = math.rsqrt %16 : vector<8x1xf32>
    %18 = vector.broadcast %17 : vector<8x1xf32> to vector<8x256xf32>
    %19 = arith.mulf %14, %18 : vector<8x256xf32>
    %c0_8 = arith.constant 0 : index
    %c0_9 = arith.constant 0 : index
    %20 = vector.load %arg4[%c0_8, %c0_9] : memref<8x1xf32, #tpu.memory_space<vmem>>, vector<8x1xf32>
    %21 = vector.broadcast %20 : vector<8x1xf32> to vector<8x256xf32>
    %22 = arith.mulf %19, %21 : vector<8x256xf32>
    %c0_10 = arith.constant 0 : index
    %c0_11 = arith.constant 0 : index
    %23 = vector.load %arg5[%c0_10, %c0_11] : memref<8x1xf32, #tpu.memory_space<vmem>>, vector<8x1xf32>
    %24 = vector.broadcast %23 : vector<8x1xf32> to vector<8x256xf32>
    %25 = arith.addf %22, %24 : vector<8x256xf32>
    %cst_12 = arith.constant 0.000000e+00 : f32
    %26 = vector.broadcast %cst_12 : f32 to vector<8x256xf32>
    %27 = arith.cmpf oge, %25, %26 : vector<8x256xf32>
    %cst_13 = arith.constant 0.00999999977 : f32
    %28 = vector.broadcast %cst_13 : f32 to vector<8x256xf32>
    %29 = arith.mulf %28, %25 : vector<8x256xf32>
    %30 = arith.select %27, %25, %29 : vector<8x256xi1>, vector<8x256xf32>
    %c0_14 = arith.constant 0 : index
    %c0_15 = arith.constant 0 : index
    %31 = vector.load %arg6[%c0_14, %c0_15] : memref<2x8xf32, #tpu.memory_space<vmem>>, vector<2x8xf32>
    %cst_16 = arith.constant dense<0.000000e+00> : vector<2x256xf32>
    %32 = tpu.matmul %31, %30, %cst_16 {dimension_numbers = #tpu.dot_dimension_numbers<[1], [0], [0], [1], [0, 0, 1, 1], [], []>} : vector<2x8xf32>, vector<8x256xf32>, vector<2x256xf32> -> vector<2x256xf32>
    %c0_17 = arith.constant 0 : index
    %c0_18 = arith.constant 0 : index
    %33 = vector.load %arg7[%c0_17, %c0_18] : memref<2x1xf32, #tpu.memory_space<vmem>>, vector<2x1xf32>
    %34 = vector.broadcast %33 : vector<2x1xf32> to vector<2x256xf32>
    %35 = arith.addf %32, %34 : vector<2x256xf32>
    %36 = arith.negf %35 : vector<2x256xf32>
    %37 = math.exp %36 : vector<2x256xf32>
    %cst_19 = arith.constant 1.000000e+00 : f32
    %38 = vector.broadcast %cst_19 : f32 to vector<2x256xf32>
    %39 = arith.addf %38, %37 : vector<2x256xf32>
    %40 = arith.divf %38, %39 : vector<2x256xf32>
    %c0_20 = arith.constant 0 : index
    %c0_21 = arith.constant 0 : index
    %c0_22 = arith.constant 0 : index
    %41 = vector.load %arg8[%c0_20, %c0_21, %c0_22] : memref<1x2x256xf32, #tpu.memory_space<vmem>>, vector<1x2x256xf32>
    %42 = vector.shape_cast %41 : vector<1x2x256xf32> to vector<2x256xf32>
    %43 = vector.shape_cast %40 : vector<2x256xf32> to vector<1x2x256xf32>
    tpu.vector_store %arg8[%c0_20, %c0_21, %c0_22], %43 {strides = array<i32>} : memref<1x2x256xf32, #tpu.memory_space<vmem>>, vector<1x2x256xf32>,
    return
  }
  func.func @transform_0(%arg0: i32, %arg1: i32) -> (i32, i32, i32) {
    %c0_i32 = arith.constant 0 : i32
    %c0_i32_0 = arith.constant 0 : i32
    return %arg0, %c0_i32, %arg1 : i32, i32, i32
  }
  func.func @transform_1(%arg0: i32, %arg1: i32) -> (i32, i32) {
    %c0_i32 = arith.constant 0 : i32
    %c0_i32_0 = arith.constant 0 : i32
    %c0_i32_1 = arith.constant 0 : i32
    return %c0_i32, %c0_i32_0 : i32, i32
  }
  func.func @transform_2(%arg0: i32, %arg1: i32) -> (i32, i32) {
    %c0_i32 = arith.constant 0 : i32
    %c0_i32_0 = arith.constant 0 : i32
    %c0_i32_1 = arith.constant 0 : i32
    return %c0_i32, %c0_i32_0 : i32, i32
  }
  func.func @transform_3(%arg0: i32, %arg1: i32) -> (i32, i32) {
    %c0_i32 = arith.constant 0 : i32
    %c0_i32_0 = arith.constant 0 : i32
    %c0_i32_1 = arith.constant 0 : i32
    return %c0_i32, %c0_i32_0 : i32, i32
  }
  func.func @transform_4(%arg0: i32, %arg1: i32) -> (i32, i32) {
    %c0_i32 = arith.constant 0 : i32
    %c0_i32_0 = arith.constant 0 : i32
    %c0_i32_1 = arith.constant 0 : i32
    return %c0_i32, %c0_i32_0 : i32, i32
  }
  func.func @transform_5(%arg0: i32, %arg1: i32) -> (i32, i32) {
    %c0_i32 = arith.constant 0 : i32
    %c0_i32_0 = arith.constant 0 : i32
    %c0_i32_1 = arith.constant 0 : i32
    return %c0_i32, %c0_i32_0 : i32, i32
  }
  func.func @transform_6(%arg0: i32, %arg1: i32) -> (i32, i32, i32) {
    %c0_i32 = arith.constant 0 : i32
    %c0_i32_0 = arith.constant 0 : i32
    return %arg0, %c0_i32, %arg1 : i32, i32, i32
  }
}

</mosaic_0001>

<llo_original>
// kernel: mlp_3layer_forward.4
$region0: #{mlp_3layer_forward.4}
  #allocation0 [shape = 'u32[]', space=smem, size = 0x4, offset = 0x4, fixed_abs, tag = 'smem constant byte address 0x4 - core index']
  #allocation1 [shape = 'u32[144,128]{1,0:T(1,128)}', space=vmem, size = 0x12000, scoped, tag = 'internal scratch']
  %s0 = inlined_call_operand.vmem [shape: bf16[2,32,256], index: 0, kind: input, shape index: {}]
  %s1 = inlined_call_operand.vmem [shape: f32[32,2], index: 1, kind: input, shape index: {}]
  %s2 = inlined_call_operand.vmem [shape: f32[32,1], index: 2, kind: input, shape index: {}]
  %s3 = inlined_call_operand.vmem [shape: f32[32,1], index: 3, kind: input, shape index: {}]
  %s4 = inlined_call_operand.vmem [shape: f32[8,32], index: 4, kind: input, shape index: {}]
  %s5 = inlined_call_operand.vmem [shape: bf16[2,8,256], index: 5, kind: output, shape index: {0}]
  %s6 = inlined_call_operand.vmem [shape: f32[2,8,2], index: 6, kind: output, shape index: {1}]
  %7 = xla_tuple %s5, %s6
  %s8 = sld [smem:[#allocation0]]
  $region65: #{mlp_3layer_forward.4} parent=0
    _
  %s10 = ssub.s32 1, %s8
  %s11 = scalar_select 0, %s10, %s8
  loop: start=0, step=1, limit=4
  $region2: #{mlp_3layer_forward.4} parent=0 // loop_pre_header
    _
  $region3: #{mlp_3layer_forward.4} parent=0 // loop_header
    %s13 = sphi 0, %s17
    %p14 = scmp.ge.s32.totalorder %s13, 4
    %s20 = sphi 0, %s32
    %s21 = sphi 0, %s28
    %s22 = sphi 0, %s20
    %s23 = sphi 0, %s21
    %s24 = sphi 0, %s22
    %s25 = sphi 0, %s23
    %s37 = sphi 0, %s39
    %s40 = sphi 0, %s37
    %s41 = sphi 0, %s40
    %s57 = sphi 0, %s41
    %s61 = sphi 0, %s61
    %s63 = sphi 0, %s61
    %s64 = sphi 0, %s63
    %s78 = sphi 0, %s64
    %s82 = sphi 0, %s82
    %s84 = sphi 0, %s82
    %s85 = sphi 0, %s84
    %s99 = sphi 0, %s85
    %s103 = sphi 0, %s103
    %s105 = sphi 0, %s103
    %s106 = sphi 0, %s105
    %s120 = sphi 0, %s106
    %s124 = sphi 0, %s124
    %s126 = sphi 0, %s124
    %s127 = sphi 0, %s126
    %s141 = sphi 0, %s127
    %s149 = sphi 0, %s151
    %s152 = sphi 0, %s149
    %s153 = sphi 0, %s152
    %s169 = sphi 0, %s153
    %s175 = sphi 0, %s177
    %s178 = sphi 0, %s175
    %s179 = sphi 0, %s178
    %s195 = sphi 0, %s179
  $region4: #{mlp_3layer_forward.4} parent=0 // loop_header_branch
    %16 = sbr.rel (%p14) target = $region8
  $region5: #{mlp_3layer_forward.4} parent=0 // loop_body
    %s18 = ssub.s32 %s13, 1
    %s19 = ssub.s32 %s13, 2
    %s26 = sadd.s32 1, %s21
    %p27 = scmp.ge.s32.totalorder %s26, 1
    %s28 = scalar_select %p27, 0, %s26
    %s29 = sadd.s32 1, %s20
    %s30 = scalar_select %p27, %s29, %s20
    %p31 = scmp.ge.s32.totalorder %s30, 2
    %s32 = scalar_select %p31, 0, %s30
    %s33 = ssub.s32 %s20, %s32
    %s34 = ssub.s32 %s21, %s28
    %s35 = sor.u32 %s33, %s34
    %p36 = scmp.eq.s32.totalorder %s35, 0
    %s38 = sadd.s32 %s37, 1
    %s39 = scalar_select %p36, %s37, %s38
    %p42 = pneg %p36
    %p43 = scmp.eq.s32.totalorder %s13, 1
    %p44 = por %p42, %p43
    %p45 = scmp.ne.s32.totalorder %s37, %s40
    %p46 = scmp.eq.s32.totalorder %s13, 0
    %p47 = por %p45, %p46
    %p48 = scmp.ne.s32.totalorder %s37, %s40
    %p49 = scmp.eq.s32.totalorder %s18, 1
    %p50 = por %p48, %p49
    %p51 = scmp.ne.s32.totalorder %s40, %s41
    %p52 = scmp.eq.s32.totalorder %s18, 0
    %p53 = por %p51, %p52
    %p54 = scmp.ne.s32.totalorder %s40, %s41
    %p55 = scmp.eq.s32.totalorder %s19, 1
    %p56 = por %p54, %p55
    %p58 = scmp.ne.s32.totalorder %s41, %s57
    %p59 = scmp.eq.s32.totalorder %s19, 0
    %p60 = por %p58, %p59
    %s62 = sadd.s32 %s61, 1
    %p65 = scmp.eq.s32.totalorder %s13, 1
    %p66 = scmp.ne.s32.totalorder %s61, %s63
    %p67 = scmp.eq.s32.totalorder %s13, 0
    %p68 = por %p66, %p67
    %p69 = scmp.ne.s32.totalorder %s61, %s63
    %p70 = scmp.eq.s32.totalorder %s18, 1
    %p71 = por %p69, %p70
    %p72 = scmp.ne.s32.totalorder %s63, %s64
    %p73 = scmp.eq.s32.totalorder %s18, 0
    %p74 = por %p72, %p73
    %p75 = scmp.ne.s32.totalorder %s63, %s64
    %p76 = scmp.eq.s32.totalorder %s19, 1
    %p77 = por %p75, %p76
    %p79 = scmp.ne.s32.totalorder %s64, %s78
    %p80 = scmp.eq.s32.totalorder %s19, 0
    %p81 = por %p79, %p80
    %s83 = sadd.s32 %s82, 1
    %p86 = scmp.eq.s32.totalorder %s13, 1
    %p87 = scmp.ne.s32.totalorder %s82, %s84
    %p88 = scmp.eq.s32.totalorder %s13, 0
    %p89 = por %p87, %p88
    %p90 = scmp.ne.s32.totalorder %s82, %s84
    %p91 = scmp.eq.s32.totalorder %s18, 1
    %p92 = por %p90, %p91
    %p93 = scmp.ne.s32.totalorder %s84, %s85
    %p94 = scmp.eq.s32.totalorder %s18, 0
    %p95 = por %p93, %p94
    %p96 = scmp.ne.s32.totalorder %s84, %s85
    %p97 = scmp.eq.s32.totalorder %s19, 1
    %p98 = por %p96, %p97
    %p100 = scmp.ne.s32.totalorder %s85, %s99
    %p101 = scmp.eq.s32.totalorder %s19, 0
    %p102 = por %p100, %p101
    %s104 = sadd.s32 %s103, 1
    %p107 = scmp.eq.s32.totalorder %s13, 1
    %p108 = scmp.ne.s32.totalorder %s103, %s105
    %p109 = scmp.eq.s32.totalorder %s13, 0
    %p110 = por %p108, %p109
    %p111 = scmp.ne.s32.totalorder %s103, %s105
    %p112 = scmp.eq.s32.totalorder %s18, 1
    %p113 = por %p111, %p112
    %p114 = scmp.ne.s32.totalorder %s105, %s106
    %p115 = scmp.eq.s32.totalorder %s18, 0
    %p116 = por %p114, %p115
    %p117 = scmp.ne.s32.totalorder %s105, %s106
    %p118 = scmp.eq.s32.totalorder %s19, 1
    %p119 = por %p117, %p118
    %p121 = scmp.ne.s32.totalorder %s106, %s120
    %p122 = scmp.eq.s32.totalorder %s19, 0
    %p123 = por %p121, %p122
    %s125 = sadd.s32 %s124, 1
    %p128 = scmp.eq.s32.totalorder %s13, 1
    %p129 = scmp.ne.s32.totalorder %s124, %s126
    %p130 = scmp.eq.s32.totalorder %s13, 0
    %p131 = por %p129, %p130
    %p132 = scmp.ne.s32.totalorder %s124, %s126
    %p133 = scmp.eq.s32.totalorder %s18, 1
    %p134 = por %p132, %p133
    %p135 = scmp.ne.s32.totalorder %s126, %s127
    %p136 = scmp.eq.s32.totalorder %s18, 0
    %p137 = por %p135, %p136
    %p138 = scmp.ne.s32.totalorder %s126, %s127
    %p139 = scmp.eq.s32.totalorder %s19, 1
    %p140 = por %p138, %p139
    %p142 = scmp.ne.s32.totalorder %s127, %s141
    %p143 = scmp.eq.s32.totalorder %s19, 0
    %p144 = por %p142, %p143
    %s145 = ssub.s32 %s20, %s32
    %s146 = ssub.s32 %s21, %s28
    %s147 = sor.u32 %s145, %s146
    %p148 = scmp.eq.s32.totalorder %s147, 0
    %s150 = sadd.s32 %s149, 1
    %s151 = scalar_select %p148, %s149, %s150
    %p154 = pneg %p148
    %p155 = scmp.eq.s32.totalorder %s13, 1
    %p156 = por %p154, %p155
    %p157 = scmp.ne.s32.totalorder %s149, %s152
    %p158 = scmp.eq.s32.totalorder %s13, 0
    %p159 = por %p157, %p158
    %p160 = scmp.ne.s32.totalorder %s149, %s152
    %p161 = scmp.eq.s32.totalorder %s18, 1
    %p162 = por %p160, %p161
    %p163 = scmp.ne.s32.totalorder %s152, %s153
    %p164 = scmp.eq.s32.totalorder %s18, 0
    %p165 = por %p163, %p164
    %p166 = scmp.ne.s32.totalorder %s152, %s153
    %p167 = scmp.eq.s32.totalorder %s19, 1
    %p168 = por %p166, %p167
    %p170 = scmp.ne.s32.totalorder %s153, %s169
    %p171 = scmp.eq.s32.totalorder %s19, 0
    %p172 = por %p170, %p171
    %s173 = ssub.s32 %s20, %s32
    %p174 = scmp.eq.s32.totalorder %s173, 0
    %s176 = sadd.s32 %s175, 1
    %s177 = scalar_select %p174, %s175, %s176
    %p180 = pneg %p174
    %p181 = scmp.eq.s32.totalorder %s13, 1
    %p182 = por %p180, %p181
    %p183 = scmp.ne.s32.totalorder %s175, %s178
    %p184 = scmp.eq.s32.totalorder %s13, 0
    %p185 = por %p183, %p184
    %p186 = scmp.ne.s32.totalorder %s175, %s178
    %p187 = scmp.eq.s32.totalorder %s18, 1
    %p188 = por %p186, %p187
    %p189 = scmp.ne.s32.totalorder %s178, %s179
    %p190 = scmp.eq.s32.totalorder %s18, 0
    %p191 = por %p189, %p190
    %p192 = scmp.ne.s32.totalorder %s178, %s179
    %p193 = scmp.eq.s32.totalorder %s19, 1
    %p194 = por %p192, %p193
    %p196 = scmp.ne.s32.totalorder %s179, %s195
    %p197 = scmp.eq.s32.totalorder %s19, 0
    %p198 = por %p196, %p197
    %p199 = scmp.le.s32.totalorder 1, %s13
    %p200 = scmp.lt.s32.totalorder %s13, 3
    %p201 = pnand %p199, %p200
    %p202 = pneg %p201
    // Predicated region
    $region9: #{mlp_3layer_forward.4} parent=5 // pred_check
      _
    $region10: #{mlp_3layer_forward.4} parent=5 // pred_check_branch
      %204 = sbr.rel (%p201) target = $region12
    $region11: #{mlp_3layer_forward.4} parent=5 // pred_region
      %s205 = ssub.s32 %s13, 1
      // Predicated region
      $region13: #{mlp_3layer_forward.4} parent=11 // pred_check
        %p206 = pneg %p74
      $region14: #{mlp_3layer_forward.4} parent=11 // pred_check_branch
        %208 = sbr.rel (%p206) target = $region16
      $region15: #{mlp_3layer_forward.4} parent=11 // pred_region
        _
      $region16: #{mlp_3layer_forward.4} parent=11 // pred_fallthru
        _
      // Predicated region
      $region17: #{mlp_3layer_forward.4} parent=11 // pred_check
        %p209 = pneg %p95
      $region18: #{mlp_3layer_forward.4} parent=11 // pred_check_branch
        %211 = sbr.rel (%p209) target = $region20
      $region19: #{mlp_3layer_forward.4} parent=11 // pred_region
        _
      $region20: #{mlp_3layer_forward.4} parent=11 // pred_fallthru
        _
      // Predicated region
      $region21: #{mlp_3layer_forward.4} parent=11 // pred_check
        %p212 = pneg %p116
      $region22: #{mlp_3layer_forward.4} parent=11 // pred_check_branch
        %214 = sbr.rel (%p212) target = $region24
      $region23: #{mlp_3layer_forward.4} parent=11 // pred_region
        _
      $region24: #{mlp_3layer_forward.4} parent=11 // pred_fallthru
        _
      // Predicated region
      $region25: #{mlp_3layer_forward.4} parent=11 // pred_check
        %p215 = pneg %p137
      $region26: #{mlp_3layer_forward.4} parent=11 // pred_check_branch
        %217 = sbr.rel (%p215) target = $region28
      $region27: #{mlp_3layer_forward.4} parent=11 // pred_region
        _
      $region28: #{mlp_3layer_forward.4} parent=11 // pred_fallthru
        _
    $region12: #{mlp_3layer_forward.4} parent=5 // pred_fallthru
      _
    %p218 = scmp.lt.s32.totalorder %s13, 2
    // Predicated region
    $region29: #{mlp_3layer_forward.4} parent=5 // pred_check
      %p219 = pneg %p218
    $region30: #{mlp_3layer_forward.4} parent=5 // pred_check_branch
      %221 = sbr.rel (%p219) target = $region32
    $region31: #{mlp_3layer_forward.4} parent=5 // pred_region
      // Predicated region
      $region33: #{mlp_3layer_forward.4} parent=31 // pred_check
        %p222 = pneg %p47
      $region34: #{mlp_3layer_forward.4} parent=31 // pred_check_branch
        %224 = sbr.rel (%p222) target = $region36
      $region35: #{mlp_3layer_forward.4} parent=31 // pred_region
        %s225 = smul.u32 2, %s21
        %p226 = scmp.lt.s32.totalorder %s20, 1
        %s227 = scalar_select %p226, %s20, 1
        %p228 = scmp.lt.s32.totalorder %s225, 1
        %s229 = scalar_select %p228, %s225, 1
        %s230 = smul.addr %s227, 8
        %s231 = sadd.s32 %s229, %s230
        %s232 = smul.addr %s231, 4
        %s233 = scalar_lea.vmem %s0, %s232
        %s234 = smul.u32 2, %s21
      $region36: #{mlp_3layer_forward.4} parent=31 // pred_fallthru
        _
    $region32: #{mlp_3layer_forward.4} parent=5 // pred_fallthru
      _
    %p235 = scmp.le.s32.totalorder 1, %s13
    %p236 = scmp.lt.s32.totalorder %s13, 3
    %p237 = pnand %p235, %p236
    %p238 = pneg %p237
    // Predicated region
    $region37: #{mlp_3layer_forward.4} parent=5 // pred_check
      _
    $region38: #{mlp_3layer_forward.4} parent=5 // pred_check_branch
      %240 = sbr.rel (%p237) target = $region40
    $region39: #{mlp_3layer_forward.4} parent=5 // pred_region
      %s241 = ssub.s32 %s13, 1
      %s242 = smul.u32 2, %s23
      %p243 = scmp.lt.s32.totalorder %s22, 1
      %s244 = scalar_select %p243, %s22, 1
      %p245 = scmp.lt.s32.totalorder %s242, 1
      %s246 = scalar_select %p245, %s242, 1
      %s247 = smul.addr %s244, 8
      %s248 = sadd.s32 %s246, %s247
      %s249 = smul.addr %s248, 4
      %s250 = scalar_lea.vmem %s0, %s249
      %p251 = pneg %p53
      %p252 = pneg %p50
      %p253 = pneg %p74
      %p254 = pneg %p71
      %p255 = pneg %p95
      %p256 = pneg %p92
      %p257 = pneg %p116
      %p258 = pneg %p113
      %p259 = pneg %p137
      %p260 = pneg %p134
      %p261 = pneg %p165
      %p262 = pneg %p162
      %s263 = smul.u32 2, %s23
      %p264 = scmp.lt.s32.totalorder %s22, 1
      %s265 = scalar_select %p264, %s22, 1
      %p266 = scmp.lt.s32.totalorder %s263, 1
      %s267 = scalar_select %p266, %s263, 1
      %s268 = smul.addr %s265, 2
      %s269 = sadd.s32 %s267, %s268
      %s270 = smul.addr %s269, 4
      %s271 = scalar_lea.vmem %s5, %s270
      %p272 = pneg %p191
      %p273 = pneg %p188
      %p274 = scmp.lt.s32.totalorder %s22, 1
      %s275 = scalar_select %p274, %s22, 1
      %s276 = smul.addr %s275, 8
      %s277 = scalar_lea.vmem %s6, %s276
      %s278 = smul.u32 2, %s23
      %p279 = scmp.lt.s32.totalorder %s22, 1
      %s280 = scalar_select %p279, %s22, 1
      %p281 = scmp.lt.s32.totalorder %s278, 1
      %s282 = scalar_select %p281, %s278, 1
      %s283 = smul.addr %s280, 8
      %s284 = sadd.s32 %s282, %s283
      %s285 = smul.addr %s284, 4
      %s286 = scalar_lea.vmem %s0, %s285
      %s287 = smul.u32 2, %s23
      %s288 = smul.u32 2, %s23
      %p289 = scmp.lt.s32.totalorder %s22, 1
      %s290 = scalar_select %p289, %s22, 1
      %p291 = scmp.lt.s32.totalorder %s288, 1
      %s292 = scalar_select %p291, %s288, 1
      %s293 = smul.addr %s290, 2
      %s294 = sadd.s32 %s292, %s293
      %s295 = smul.addr %s294, 4
      %s296 = scalar_lea.vmem %s5, %s295
      %s297 = smul.u32 2, %s23
      %p298 = scmp.lt.s32.totalorder %s22, 1
      %s299 = scalar_select %p298, %s22, 1
      %s300 = smul.addr %s299, 8
      %s301 = scalar_lea.vmem %s6, %s300
      %p302 = scmp.eq.s32.totalorder %s23, 0
      // Predicated region
      $region41: #{mlp_3layer_forward.4} parent=39 // pred_check
        %p303 = pneg %p302
      $region42: #{mlp_3layer_forward.4} parent=39 // pred_check_branch
        %305 = sbr.rel (%p303) target = $region44
      $region43: #{mlp_3layer_forward.4} parent=39 // pred_region
        %vm306 = vcmask 15360
        %307 = vst.msk [vmem:[%s301] sm:$0xff] %vm306, 0.0
      $region44: #{mlp_3layer_forward.4} parent=39 // pred_fallthru
        _
      %v308 = vld [vmem:[%s1] sm:$0xff]
      %v309 = vld [vmem:[%s1 + $0x8] sm:$0xff]
      %v310 = vld [vmem:[%s1 + $0x10] sm:$0xff]
      %v311 = vld [vmem:[%s1 + $0x18] sm:$0xff]
      %v312 = vmul.f32 %v308, 0.001953125
      %v313 = vmul.f32 %v309, 0.001953125
      %v314 = vmul.f32 %v310, 0.001953125
      %v315 = vmul.f32 %v311, 0.001953125
      %v316 = vmul.f32 %v312, %v312
      %v317 = vmul.f32 %v313, %v313
      %v318 = vmul.f32 %v314, %v314
      %v319 = vmul.f32 %v315, %v315
      %324 = vrot.lane.b32.xlu0 %v316, 1
      %v325 = vpop.permute.xlu0 %324
      %326 = vrot.lane.b32.xlu0 %v317, 1
      %v327 = vpop.permute.xlu0 %326
      %328 = vrot.lane.b32.xlu0 %v318, 1
      %v329 = vpop.permute.xlu0 %328
      %330 = vrot.lane.b32.xlu0 %v319, 1
      %v331 = vpop.permute.xlu0 %330
      %v336 = vsub.f32 %v312, %v325
      %v337 = vsub.f32 %v313, %v327
      %v338 = vsub.f32 %v314, %v329
      %v339 = vsub.f32 %v315, %v331
      %v340 = vmax.f32 %v336, 0.0
      %v341 = vmax.f32 %v337, 0.0
      %v342 = vmax.f32 %v338, 0.0
      %v343 = vmax.f32 %v339, 0.0
      %v344 = vld [vmem:[%s286] sm:$0xff]
      %v345 = vld [vmem:[%s286 + $0x8] sm:$0xff]
      %v346 = vld [vmem:[%s286 + $0x10] sm:$0xff]
      %v347 = vld [vmem:[%s286 + $0x18] sm:$0xff]
      %v348 = vunpack.c.l.bf16 %v344
      %v349 = vunpack.c.h.bf16 %v344
      %v350 = vunpack.c.l.bf16 %v345
      %v351 = vunpack.c.h.bf16 %v345
      %v352 = vunpack.c.l.bf16 %v346
      %v353 = vunpack.c.h.bf16 %v346
      %v354 = vunpack.c.l.bf16 %v347
      %v355 = vunpack.c.h.bf16 %v347
      %357 = vset.pattern.permute.xlu0 0
      %358 = vperm.xlu0 %357, %v312
      %v359 = vpop.permute.xlu0 %358
      %362 = vset.pattern.permute.xlu0 0
      %363 = vperm.xlu0 %362, %v313
      %v364 = vpop.permute.xlu0 %363
      %367 = vset.pattern.permute.xlu0 0
      %368 = vperm.xlu0 %367, %v314
      %v369 = vpop.permute.xlu0 %368
      %372 = vset.pattern.permute.xlu0 0
      %373 = vperm.xlu0 %372, %v315
      %v374 = vpop.permute.xlu0 %373
      %v376 = vsub.f32 %v348, %v359
      %v377 = vsub.f32 %v349, %v359
      %v378 = vsub.f32 %v350, %v364
      %v379 = vsub.f32 %v351, %v364
      %v380 = vsub.f32 %v352, %v369
      %v381 = vsub.f32 %v353, %v369
      %v382 = vsub.f32 %v354, %v374
      %v383 = vsub.f32 %v355, %v374
      %v384 = vadd.f32 %v340, 1e-05
      %v385 = vadd.f32 %v341, 1e-05
      %v386 = vadd.f32 %v342, 1e-05
      %v387 = vadd.f32 %v343, 1e-05
      %v388 = vrsqrt.pop %v384
      %v389 = vrsqrt.pop %v385
      %v390 = vrsqrt.pop %v386
      %v391 = vrsqrt.pop %v387
      %393 = vset.pattern.permute.xlu0 1
      %394 = vperm.xlu0 %393, %v388
      %v395 = vpop.permute.xlu0 %394
      %398 = vset.pattern.permute.xlu0 1
      %399 = vperm.xlu0 %398, %v389
      %v400 = vpop.permute.xlu0 %399
      %403 = vset.pattern.permute.xlu0 1
      %404 = vperm.xlu0 %403, %v390
      %v405 = vpop.permute.xlu0 %404
      %408 = vset.pattern.permute.xlu0 1
      %409 = vperm.xlu0 %408, %v391
      %v410 = vpop.permute.xlu0 %409
      %v412 = vmul.f32 %v376, %v395
      %v413 = vmul.f32 %v377, %v395
      %v414 = vmul.f32 %v378, %v400
      %v415 = vmul.f32 %v379, %v400
      %v416 = vmul.f32 %v380, %v405
      %v417 = vmul.f32 %v381, %v405
      %v418 = vmul.f32 %v382, %v410
      %v419 = vmul.f32 %v383, %v410
      %v420 = vld [vmem:[%s2] sm:$0xff]
      %v421 = vld [vmem:[%s2 + $0x8] sm:$0xff]
      %v422 = vld [vmem:[%s2 + $0x10] sm:$0xff]
      %v423 = vld [vmem:[%s2 + $0x18] sm:$0xff]
      %425 = vset.pattern.permute.xlu0 0
      %426 = vperm.xlu0 %425, %v420
      %v427 = vpop.permute.xlu0 %426
      %430 = vset.pattern.permute.xlu0 0
      %431 = vperm.xlu0 %430, %v421
      %v432 = vpop.permute.xlu0 %431
      %435 = vset.pattern.permute.xlu0 0
      %436 = vperm.xlu0 %435, %v422
      %v437 = vpop.permute.xlu0 %436
      %440 = vset.pattern.permute.xlu0 0
      %441 = vperm.xlu0 %440, %v423
      %v442 = vpop.permute.xlu0 %441
      %v444 = vmul.f32 %v412, %v427
      %v445 = vmul.f32 %v413, %v427
      %v446 = vmul.f32 %v414, %v432
      %v447 = vmul.f32 %v415, %v432
      %v448 = vmul.f32 %v416, %v437
      %v449 = vmul.f32 %v417, %v437
      %v450 = vmul.f32 %v418, %v442
      %v451 = vmul.f32 %v419, %v442
      %v452 = vld [vmem:[%s3] sm:$0xff]
      %v453 = vld [vmem:[%s3 + $0x8] sm:$0xff]
      %v454 = vld [vmem:[%s3 + $0x10] sm:$0xff]
      %v455 = vld [vmem:[%s3 + $0x18] sm:$0xff]
      %457 = vset.pattern.permute.xlu0 0
      %458 = vperm.xlu0 %457, %v452
      %v459 = vpop.permute.xlu0 %458
      %462 = vset.pattern.permute.xlu0 0
      %463 = vperm.xlu0 %462, %v453
      %v464 = vpop.permute.xlu0 %463
      %467 = vset.pattern.permute.xlu0 0
      %468 = vperm.xlu0 %467, %v454
      %v469 = vpop.permute.xlu0 %468
      %472 = vset.pattern.permute.xlu0 0
      %473 = vperm.xlu0 %472, %v455
      %v474 = vpop.permute.xlu0 %473
      %v476 = vadd.f32 %v444, %v459
      %v477 = vadd.f32 %v445, %v459
      %v478 = vadd.f32 %v446, %v464
      %v479 = vadd.f32 %v447, %v464
      %v480 = vadd.f32 %v448, %v469
      %v481 = vadd.f32 %v449, %v469
      %v482 = vadd.f32 %v450, %v474
      %v483 = vadd.f32 %v451, %v474
      %vm484 = vcmp.ge.f32.partialorder %v476, 0.0
      %vm485 = vcmp.ge.f32.partialorder %v477, 0.0
      %vm486 = vcmp.ge.f32.partialorder %v478, 0.0
      %vm487 = vcmp.ge.f32.partialorder %v479, 0.0
      %vm488 = vcmp.ge.f32.partialorder %v480, 0.0
      %vm489 = vcmp.ge.f32.partialorder %v481, 0.0
      %vm490 = vcmp.ge.f32.partialorder %v482, 0.0
      %vm491 = vcmp.ge.f32.partialorder %v483, 0.0
      %v492 = vmul.f32 %v476, 0.01
      %v493 = vmul.f32 %v477, 0.01
      %v494 = vmul.f32 %v478, 0.01
      %v495 = vmul.f32 %v479, 0.01
      %v496 = vmul.f32 %v480, 0.01
      %v497 = vmul.f32 %v481, 0.01
      %v498 = vmul.f32 %v482, 0.01
      %v499 = vmul.f32 %v483, 0.01
      %v500 = vsel %vm484, %v476, %v492
      %v501 = vsel %vm485, %v477, %v493
      %v502 = vsel %vm486, %v478, %v494
      %v503 = vsel %vm487, %v479, %v495
      %v504 = vsel %vm488, %v480, %v496
      %v505 = vsel %vm489, %v481, %v497
      %v506 = vsel %vm490, %v482, %v498
      %v507 = vsel %vm491, %v483, %v499
      %v508 = vld [vmem:[%s4] sm:$0xff]
      %vm509 = vcmask 261120
      %v511 = vsel %vm509, %v508, 0
      %513 = vmatprep.subr.mxu0 0.0
      %514 = vmatpush1.msra.mxu0 0.0
      %515 = vmatprep.subr.mxu0 0.0
      %516 = vmatpush1.msra.mxu0 0.0
      %517 = vmatprep.subr.mxu0 0.0
      %518 = vmatpush1.msra.mxu0 0.0
      %519 = vmatprep.subr.mxu0 0.0
      %520 = vmatpush1.msra.mxu0 0.0
      %521 = vmatprep.subr.mxu0 0.0
      %522 = vmatpush1.msra.mxu0 0.0
      %523 = vmatprep.subr.mxu0 0.0
      %524 = vmatpush1.msra.mxu0 0.0
      %525 = vmatprep.subr.mxu0 0.0
      %526 = vmatpush1.msra.mxu0 0.0
      %527 = vmatprep.subr.mxu0 0.0
      %528 = vmatpush1.msra.mxu0 0.0
      %529 = vmatprep.subr.mxu0 0.0
      %530 = vmatpush1.msra.mxu0 0.0
      %531 = vmatprep.subr.mxu0 0.0
      %532 = vmatpush1.msra.mxu0 0.0
      %533 = vmatprep.subr.mxu0 0.0
      %534 = vmatpush1.msra.mxu0 0.0
      %535 = vmatprep.subr.mxu0 0.0
      %536 = vmatpush1.msra.mxu0 0.0
      %537 = vmatprep.subr.mxu0 %v507
      %538 = vmatpush1.msra.mxu0 %v506
      %539 = vmatprep.subr.mxu0 %v505
      %540 = vmatpush1.msra.mxu0 %v504
      %541 = vmatprep.subr.mxu0 %v503
      %542 = vmatpush1.msra.mxu0 %v502
      %543 = vmatprep.subr.mxu0 %v501
      %544 = vmatpush1.msra.mxu0 %v500
      %545 = vmatprep.subr.mxu0 0.0
      %546 = vmatpush2.msra.mxu0 0.0
      %547 = vmatprep.subr.mxu0 0.0
      %548 = vmatpush2.msra.mxu0 0.0
      %549 = vmatprep.subr.mxu0 0.0
      %550 = vmatpush2.msra.mxu0 0.0
      %551 = vmatprep.subr.mxu0 0.0
      %552 = vmatpush2.msra.mxu0 0.0
      %553 = vmatprep.subr.mxu0 0.0
      %554 = vmatpush2.msra.mxu0 0.0
      %555 = vmatprep.subr.mxu0 0.0
      %556 = vmatpush2.msra.mxu0 0.0
      %557 = vmatprep.subr.mxu0 0.0
      %558 = vmatpush2.msra.mxu0 0.0
      %559 = vmatprep.subr.mxu0 0.0
      %560 = vmatpush2.msra.mxu0 0.0
      %561 = vmatprep.subr.mxu0 0.0
      %562 = vmatpush2.msra.mxu0 0.0
      %563 = vmatprep.subr.mxu0 0.0
      %564 = vmatpush2.msra.mxu0 0.0
      %565 = vmatprep.subr.mxu0 0.0
      %566 = vmatpush2.msra.mxu0 0.0
      %567 = vmatprep.subr.mxu0 0.0
      %568 = vmatpush2.msra.mxu0 0.0
      %569 = vmatprep.subr.mxu0 0.0
      %570 = vmatpush2.msra.mxu0 0.0
      %571 = vmatprep.subr.mxu0 0.0
      %572 = vmatpush2.msra.mxu0 0.0
      %573 = vmatprep.subr.mxu0 0.0
      %574 = vmatpush2.msra.mxu0 0.0
      %575 = vmatprep.subr.mxu0 0.0
      %576 = vmatpush2.msra.mxu0 0.0
      %577 = vmatprep.mubr.f32.mxu0 0.0
      %578 = vmatmul.mubr.f32.gmra.mxu0 %v511
      %v579 = vpop.f32.mrf.mxu0
      %v580 = vadd.f32 0.0, %v579
      %v581 = vpop.f32.mrf.mxu0
      %v582 = vadd.f32 0.0, %v581
      %583 = vdwg.mxu0
      %v584 = vpack.c.bf16 %v580, %v580
      %v585 = vpack.c.bf16 %v582, %v582
      %v588 = vunpack.c.l.b16 %v584
      %v589 = vunpack.c.l.b16 %v585
      %v590 = vpack.c.b16 %v589, %v588
      %592 = vst [vmem:[%s296] sm:$0xff] %v590
      %v593 = vld [vmem:[%s301] sm:$0xff]
      %v594 = vadd.f32 %v580, %v582
      %595 = vadd.xlane.f32.xlu0 %v594
      %v596 = vpop.xlane.xlu0 %595
      %v597 = vmul.f32 %v580, %v580
      %v598 = vmul.f32 %v582, %v582
      %v599 = vadd.f32 %v597, %v598
      %600 = vadd.xlane.f32.xlu0 %v599
      %v601 = vpop.xlane.xlu0 %600
      %vm602 = vcmask 7168
      %v603 = vsel %vm602, %v596, %v601
      %v604 = vadd.f32 %v593, %v603
      %vm605 = vcmask 15360
      %606 = vst.msk [vmem:[%s301] sm:$0xff] %vm605, %v604
      %s607 = smul.u32 2, %s23
      %p608 = scmp.lt.s32.totalorder %s22, 1
      %s609 = scalar_select %p608, %s22, 1
      %p610 = scmp.lt.s32.totalorder %s607, 1
      %s611 = scalar_select %p610, %s607, 1
      %s612 = smul.addr %s609, 2
      %s613 = sadd.s32 %s611, %s612
      %s614 = smul.addr %s613, 4
      %s615 = scalar_lea.vmem %s5, %s614
      %p616 = scmp.lt.s32.totalorder %s22, 1
      %s617 = scalar_select %p616, %s22, 1
      %s618 = smul.addr %s617, 8
      %s619 = scalar_lea.vmem %s6, %s618
      // Predicated region
      $region45: #{mlp_3layer_forward.4} parent=39 // pred_check
        %p620 = pneg %p162
      $region46: #{mlp_3layer_forward.4} parent=39 // pred_check_branch
        %622 = sbr.rel (%p620) target = $region48
      $region47: #{mlp_3layer_forward.4} parent=39 // pred_region
        %s623 = smul.u32 2, %s23
      $region48: #{mlp_3layer_forward.4} parent=39 // pred_fallthru
        _
      // Predicated region
      $region49: #{mlp_3layer_forward.4} parent=39 // pred_check
        %p624 = pneg %p188
      $region50: #{mlp_3layer_forward.4} parent=39 // pred_check_branch
        %626 = sbr.rel (%p624) target = $region52
      $region51: #{mlp_3layer_forward.4} parent=39 // pred_region
        _
      $region52: #{mlp_3layer_forward.4} parent=39 // pred_fallthru
        _
    $region40: #{mlp_3layer_forward.4} parent=5 // pred_fallthru
      _
    %p627 = scmp.le.s32.totalorder 2, %s13
    // Predicated region
    $region53: #{mlp_3layer_forward.4} parent=5 // pred_check
      %p628 = pneg %p627
    $region54: #{mlp_3layer_forward.4} parent=5 // pred_check_branch
      %630 = sbr.rel (%p628) target = $region56
    $region55: #{mlp_3layer_forward.4} parent=5 // pred_region
      %s631 = ssub.s32 %s13, 2
      // Predicated region
      $region57: #{mlp_3layer_forward.4} parent=55 // pred_check
        %p632 = pneg %p168
      $region58: #{mlp_3layer_forward.4} parent=55 // pred_check_branch
        %634 = sbr.rel (%p632) target = $region60
      $region59: #{mlp_3layer_forward.4} parent=55 // pred_region
        %s635 = smul.u32 2, %s25
        %p636 = scmp.lt.s32.totalorder %s24, 1
        %s637 = scalar_select %p636, %s24, 1
        %p638 = scmp.lt.s32.totalorder %s635, 1
        %s639 = scalar_select %p638, %s635, 1
        %s640 = smul.addr %s637, 2
        %s641 = sadd.s32 %s639, %s640
        %s642 = smul.addr %s641, 4
        %s643 = scalar_lea.vmem %s5, %s642
      $region60: #{mlp_3layer_forward.4} parent=55 // pred_fallthru
        _
      // Predicated region
      $region61: #{mlp_3layer_forward.4} parent=55 // pred_check
        %p644 = pneg %p194
      $region62: #{mlp_3layer_forward.4} parent=55 // pred_check_branch
        %646 = sbr.rel (%p644) target = $region64
      $region63: #{mlp_3layer_forward.4} parent=55 // pred_region
        %p647 = scmp.lt.s32.totalorder %s24, 1
        %s648 = scalar_select %p647, %s24, 1
        %s649 = smul.addr %s648, 8
        %s650 = scalar_lea.vmem %s6, %s649
      $region64: #{mlp_3layer_forward.4} parent=55 // pred_fallthru
        _
    $region56: #{mlp_3layer_forward.4} parent=5 // pred_fallthru
      _
  $region6: #{mlp_3layer_forward.4} parent=0 // loop_footer
    %s17 = sadd.s32 1, %s13
  $region7: #{mlp_3layer_forward.4} parent=0 // loop_footer_branch
    %12 = sbr.rel target = $region3
  $region8: #{mlp_3layer_forward.4} parent=0 // loop_exit
    _

// kernel: mlp_3layer_forward.5
$region0: #{mlp_3layer_forward.5}
  #allocation0 [shape = 'u32[]', space=smem, size = 0x4, offset = 0x4, fixed_abs, tag = 'smem constant byte address 0x4 - core index']
  #allocation1 [shape = 'u32[144,128]{1,0:T(1,128)}', space=vmem, size = 0x12000, scoped, tag = 'internal scratch']
  %s0 = inlined_call_operand.vmem [shape: bf16[2,8,256], index: 0, kind: input, shape index: {}]
  %s1 = inlined_call_operand.vmem [shape: f32[8,2], index: 1, kind: input, shape index: {}]
  %s2 = inlined_call_operand.vmem [shape: f32[8,1], index: 2, kind: input, shape index: {}]
  %s3 = inlined_call_operand.vmem [shape: f32[8,1], index: 3, kind: input, shape index: {}]
  %s4 = inlined_call_operand.vmem [shape: f32[2,8], index: 4, kind: input, shape index: {}]
  %s5 = inlined_call_operand.vmem [shape: f32[2,1], index: 5, kind: input, shape index: {}]
  %s6 = inlined_call_operand.hbm [shape: f32[2,2,256], index: 6, kind: output, shape index: {}]
  %s7 = sld [smem:[#allocation0]]
  $region57: #{mlp_3layer_forward.5} parent=0
    _
  %s9 = ssub.s32 1, %s7
  %s10 = scalar_select 0, %s9, %s7
  $region1: #{mlp_3layer_forward.5} parent=0
    #allocation2 [shape = 'u8[4096]{0}', space=vmem, size = 0x1000, scoped, tag = 'output window, operand 0']
    #allocation3 [shape = 's32[2]{0}', space=sflag, size = 0x8, scoped, tag = 'scoped memory for mlp_3layer_forward.5']
    %11 = vsyncpa [#allocation3], 0
    %s12 = scalar_lea.sflag [#allocation3], 1
    %13 = vsyncpa %s12, 0
    loop: start=0, step=1, limit=4
    $region2: #{mlp_3layer_forward.5} parent=1 // loop_pre_header
      _
    $region3: #{mlp_3layer_forward.5} parent=1 // loop_header
      %s15 = sphi 0, %s19
      %p16 = scmp.ge.s32.totalorder %s15, 4
      %s22 = sphi 0, %s34
      %s23 = sphi 0, %s30
      %s24 = sphi 0, %s22
      %s25 = sphi 0, %s23
      %s26 = sphi 0, %s24
      %s27 = sphi 0, %s25
      %s39 = sphi 0, %s41
      %s42 = sphi 0, %s39
      %s43 = sphi 0, %s42
      %s59 = sphi 0, %s43
      %s63 = sphi 0, %s63
      %s65 = sphi 0, %s63
      %s66 = sphi 0, %s65
      %s80 = sphi 0, %s66
      %s84 = sphi 0, %s84
      %s86 = sphi 0, %s84
      %s87 = sphi 0, %s86
      %s101 = sphi 0, %s87
      %s105 = sphi 0, %s105
      %s107 = sphi 0, %s105
      %s108 = sphi 0, %s107
      %s122 = sphi 0, %s108
      %s126 = sphi 0, %s126
      %s128 = sphi 0, %s126
      %s129 = sphi 0, %s128
      %s143 = sphi 0, %s129
      %s147 = sphi 0, %s147
      %s149 = sphi 0, %s147
      %s150 = sphi 0, %s149
      %s164 = sphi 0, %s150
      %s172 = sphi 0, %s174
      %s175 = sphi 0, %s172
      %s176 = sphi 0, %s175
      %s192 = sphi 0, %s176
    $region4: #{mlp_3layer_forward.5} parent=1 // loop_header_branch
      %18 = sbr.rel (%p16) target = $region8
    $region5: #{mlp_3layer_forward.5} parent=1 // loop_body
      %s20 = ssub.s32 %s15, 1
      %s21 = ssub.s32 %s15, 2
      %s28 = sadd.s32 1, %s23
      %p29 = scmp.ge.s32.totalorder %s28, 1
      %s30 = scalar_select %p29, 0, %s28
      %s31 = sadd.s32 1, %s22
      %s32 = scalar_select %p29, %s31, %s22
      %p33 = scmp.ge.s32.totalorder %s32, 2
      %s34 = scalar_select %p33, 0, %s32
      %s35 = ssub.s32 %s22, %s34
      %s36 = ssub.s32 %s23, %s30
      %s37 = sor.u32 %s35, %s36
      %p38 = scmp.eq.s32.totalorder %s37, 0
      %s40 = sadd.s32 %s39, 1
      %s41 = scalar_select %p38, %s39, %s40
      %p44 = pneg %p38
      %p45 = scmp.eq.s32.totalorder %s15, 1
      %p46 = por %p44, %p45
      %p47 = scmp.ne.s32.totalorder %s39, %s42
      %p48 = scmp.eq.s32.totalorder %s15, 0
      %p49 = por %p47, %p48
      %p50 = scmp.ne.s32.totalorder %s39, %s42
      %p51 = scmp.eq.s32.totalorder %s20, 1
      %p52 = por %p50, %p51
      %p53 = scmp.ne.s32.totalorder %s42, %s43
      %p54 = scmp.eq.s32.totalorder %s20, 0
      %p55 = por %p53, %p54
      %p56 = scmp.ne.s32.totalorder %s42, %s43
      %p57 = scmp.eq.s32.totalorder %s21, 1
      %p58 = por %p56, %p57
      %p60 = scmp.ne.s32.totalorder %s43, %s59
      %p61 = scmp.eq.s32.totalorder %s21, 0
      %p62 = por %p60, %p61
      %s64 = sadd.s32 %s63, 1
      %p67 = scmp.eq.s32.totalorder %s15, 1
      %p68 = scmp.ne.s32.totalorder %s63, %s65
      %p69 = scmp.eq.s32.totalorder %s15, 0
      %p70 = por %p68, %p69
      %p71 = scmp.ne.s32.totalorder %s63, %s65
      %p72 = scmp.eq.s32.totalorder %s20, 1
      %p73 = por %p71, %p72
      %p74 = scmp.ne.s32.totalorder %s65, %s66
      %p75 = scmp.eq.s32.totalorder %s20, 0
      %p76 = por %p74, %p75
      %p77 = scmp.ne.s32.totalorder %s65, %s66
      %p78 = scmp.eq.s32.totalorder %s21, 1
      %p79 = por %p77, %p78
      %p81 = scmp.ne.s32.totalorder %s66, %s80
      %p82 = scmp.eq.s32.totalorder %s21, 0
      %p83 = por %p81, %p82
      %s85 = sadd.s32 %s84, 1
      %p88 = scmp.eq.s32.totalorder %s15, 1
      %p89 = scmp.ne.s32.totalorder %s84, %s86
      %p90 = scmp.eq.s32.totalorder %s15, 0
      %p91 = por %p89, %p90
      %p92 = scmp.ne.s32.totalorder %s84, %s86
      %p93 = scmp.eq.s32.totalorder %s20, 1
      %p94 = por %p92, %p93
      %p95 = scmp.ne.s32.totalorder %s86, %s87
      %p96 = scmp.eq.s32.totalorder %s20, 0
      %p97 = por %p95, %p96
      %p98 = scmp.ne.s32.totalorder %s86, %s87
      %p99 = scmp.eq.s32.totalorder %s21, 1
      %p100 = por %p98, %p99
      %p102 = scmp.ne.s32.totalorder %s87, %s101
      %p103 = scmp.eq.s32.totalorder %s21, 0
      %p104 = por %p102, %p103
      %s106 = sadd.s32 %s105, 1
      %p109 = scmp.eq.s32.totalorder %s15, 1
      %p110 = scmp.ne.s32.totalorder %s105, %s107
      %p111 = scmp.eq.s32.totalorder %s15, 0
      %p112 = por %p110, %p111
      %p113 = scmp.ne.s32.totalorder %s105, %s107
      %p114 = scmp.eq.s32.totalorder %s20, 1
      %p115 = por %p113, %p114
      %p116 = scmp.ne.s32.totalorder %s107, %s108
      %p117 = scmp.eq.s32.totalorder %s20, 0
      %p118 = por %p116, %p117
      %p119 = scmp.ne.s32.totalorder %s107, %s108
      %p120 = scmp.eq.s32.totalorder %s21, 1
      %p121 = por %p119, %p120
      %p123 = scmp.ne.s32.totalorder %s108, %s122
      %p124 = scmp.eq.s32.totalorder %s21, 0
      %p125 = por %p123, %p124
      %s127 = sadd.s32 %s126, 1
      %p130 = scmp.eq.s32.totalorder %s15, 1
      %p131 = scmp.ne.s32.totalorder %s126, %s128
      %p132 = scmp.eq.s32.totalorder %s15, 0
      %p133 = por %p131, %p132
      %p134 = scmp.ne.s32.totalorder %s126, %s128
      %p135 = scmp.eq.s32.totalorder %s20, 1
      %p136 = por %p134, %p135
      %p137 = scmp.ne.s32.totalorder %s128, %s129
      %p138 = scmp.eq.s32.totalorder %s20, 0
      %p139 = por %p137, %p138
      %p140 = scmp.ne.s32.totalorder %s128, %s129
      %p141 = scmp.eq.s32.totalorder %s21, 1
      %p142 = por %p140, %p141
      %p144 = scmp.ne.s32.totalorder %s129, %s143
      %p145 = scmp.eq.s32.totalorder %s21, 0
      %p146 = por %p144, %p145
      %s148 = sadd.s32 %s147, 1
      %p151 = scmp.eq.s32.totalorder %s15, 1
      %p152 = scmp.ne.s32.totalorder %s147, %s149
      %p153 = scmp.eq.s32.totalorder %s15, 0
      %p154 = por %p152, %p153
      %p155 = scmp.ne.s32.totalorder %s147, %s149
      %p156 = scmp.eq.s32.totalorder %s20, 1
      %p157 = por %p155, %p156
      %p158 = scmp.ne.s32.totalorder %s149, %s150
      %p159 = scmp.eq.s32.totalorder %s20, 0
      %p160 = por %p158, %p159
      %p161 = scmp.ne.s32.totalorder %s149, %s150
      %p162 = scmp.eq.s32.totalorder %s21, 1
      %p163 = por %p161, %p162
      %p165 = scmp.ne.s32.totalorder %s150, %s164
      %p166 = scmp.eq.s32.totalorder %s21, 0
      %p167 = por %p165, %p166
      %s168 = ssub.s32 %s22, %s34
      %s169 = ssub.s32 %s23, %s30
      %s170 = sor.u32 %s168, %s169
      %p171 = scmp.eq.s32.totalorder %s170, 0
      %s173 = sadd.s32 %s172, 1
      %s174 = scalar_select %p171, %s172, %s173
      %p177 = pneg %p171
      %p178 = scmp.eq.s32.totalorder %s15, 1
      %p179 = por %p177, %p178
      %p180 = scmp.ne.s32.totalorder %s172, %s175
      %p181 = scmp.eq.s32.totalorder %s15, 0
      %p182 = por %p180, %p181
      %p183 = scmp.ne.s32.totalorder %s172, %s175
      %p184 = scmp.eq.s32.totalorder %s20, 1
      %p185 = por %p183, %p184
      %p186 = scmp.ne.s32.totalorder %s175, %s176
      %p187 = scmp.eq.s32.totalorder %s20, 0
      %p188 = por %p186, %p187
      %p189 = scmp.ne.s32.totalorder %s175, %s176
      %p190 = scmp.eq.s32.totalorder %s21, 1
      %p191 = por %p189, %p190
      %p193 = scmp.ne.s32.totalorder %s176, %s192
      %p194 = scmp.eq.s32.totalorder %s21, 0
      %p195 = por %p193, %p194
      %p196 = scmp.le.s32.totalorder 1, %s15
      %p197 = scmp.lt.s32.totalorder %s15, 3
      %p198 = pnand %p196, %p197
      %p199 = pneg %p198
      // Predicated region
      $region9: #{mlp_3layer_forward.5} parent=5 // pred_check
        _
      $region10: #{mlp_3layer_forward.5} parent=5 // pred_check_branch
        %201 = sbr.rel (%p198) target = $region12
      $region11: #{mlp_3layer_forward.5} parent=5 // pred_region
        %s202 = ssub.s32 %s15, 1
        // Predicated region
        $region13: #{mlp_3layer_forward.5} parent=11 // pred_check
          %p203 = pneg %p76
        $region14: #{mlp_3layer_forward.5} parent=11 // pred_check_branch
          %205 = sbr.rel (%p203) target = $region16
        $region15: #{mlp_3layer_forward.5} parent=11 // pred_region
          _
        $region16: #{mlp_3layer_forward.5} parent=11 // pred_fallthru
          _
        // Predicated region
        $region17: #{mlp_3layer_forward.5} parent=11 // pred_check
          %p206 = pneg %p97
        $region18: #{mlp_3layer_forward.5} parent=11 // pred_check_branch
          %208 = sbr.rel (%p206) target = $region20
        $region19: #{mlp_3layer_forward.5} parent=11 // pred_region
          _
        $region20: #{mlp_3layer_forward.5} parent=11 // pred_fallthru
          _
        // Predicated region
        $region21: #{mlp_3layer_forward.5} parent=11 // pred_check
          %p209 = pneg %p118
        $region22: #{mlp_3layer_forward.5} parent=11 // pred_check_branch
          %211 = sbr.rel (%p209) target = $region24
        $region23: #{mlp_3layer_forward.5} parent=11 // pred_region
          _
        $region24: #{mlp_3layer_forward.5} parent=11 // pred_fallthru
          _
        // Predicated region
        $region25: #{mlp_3layer_forward.5} parent=11 // pred_check
          %p212 = pneg %p139
        $region26: #{mlp_3layer_forward.5} parent=11 // pred_check_branch
          %214 = sbr.rel (%p212) target = $region28
        $region27: #{mlp_3layer_forward.5} parent=11 // pred_region
          _
        $region28: #{mlp_3layer_forward.5} parent=11 // pred_fallthru
          _
        // Predicated region
        $region29: #{mlp_3layer_forward.5} parent=11 // pred_check
          %p215 = pneg %p160
        $region30: #{mlp_3layer_forward.5} parent=11 // pred_check_branch
          %217 = sbr.rel (%p215) target = $region32
        $region31: #{mlp_3layer_forward.5} parent=11 // pred_region
          _
        $region32: #{mlp_3layer_forward.5} parent=11 // pred_fallthru
          _
      $region12: #{mlp_3layer_forward.5} parent=5 // pred_fallthru
        _
      %p218 = scmp.lt.s32.totalorder %s15, 2
      // Predicated region
      $region33: #{mlp_3layer_forward.5} parent=5 // pred_check
        %p219 = pneg %p218
      $region34: #{mlp_3layer_forward.5} parent=5 // pred_check_branch
        %221 = sbr.rel (%p219) target = $region36
      $region35: #{mlp_3layer_forward.5} parent=5 // pred_region
        // Predicated region
        $region37: #{mlp_3layer_forward.5} parent=35 // pred_check
          %p222 = pneg %p49
        $region38: #{mlp_3layer_forward.5} parent=35 // pred_check_branch
          %224 = sbr.rel (%p222) target = $region40
        $region39: #{mlp_3layer_forward.5} parent=35 // pred_region
          %s225 = smul.u32 2, %s23
          %p226 = scmp.lt.s32.totalorder %s22, 1
          %s227 = scalar_select %p226, %s22, 1
          %p228 = scmp.lt.s32.totalorder %s225, 1
          %s229 = scalar_select %p228, %s225, 1
          %s230 = smul.addr %s227, 2
          %s231 = sadd.s32 %s229, %s230
          %s232 = smul.addr %s231, 4
          %s233 = scalar_lea.vmem %s0, %s232
          %s234 = smul.u32 2, %s23
        $region40: #{mlp_3layer_forward.5} parent=35 // pred_fallthru
          _
      $region36: #{mlp_3layer_forward.5} parent=5 // pred_fallthru
        _
      %p235 = scmp.le.s32.totalorder 1, %s15
      %p236 = scmp.lt.s32.totalorder %s15, 3
      %p237 = pnand %p235, %p236
      %p238 = pneg %p237
      // Predicated region
      $region41: #{mlp_3layer_forward.5} parent=5 // pred_check
        _
      $region42: #{mlp_3layer_forward.5} parent=5 // pred_check_branch
        %240 = sbr.rel (%p237) target = $region44
      $region43: #{mlp_3layer_forward.5} parent=5 // pred_region
        %s241 = ssub.s32 %s15, 1
        %s242 = smul.u32 2, %s25
        %p243 = scmp.lt.s32.totalorder %s24, 1
        %s244 = scalar_select %p243, %s24, 1
        %p245 = scmp.lt.s32.totalorder %s242, 1
        %s246 = scalar_select %p245, %s242, 1
        %s247 = smul.addr %s244, 2
        %s248 = sadd.s32 %s246, %s247
        %s249 = smul.addr %s248, 4
        %s250 = scalar_lea.vmem %s0, %s249
        %p251 = pneg %p55
        %p252 = pneg %p52
        %p253 = pneg %p76
        %p254 = pneg %p73
        %p255 = pneg %p97
        %p256 = pneg %p94
        %p257 = pneg %p118
        %p258 = pneg %p115
        %p259 = pneg %p139
        %p260 = pneg %p136
        %p261 = pneg %p160
        %p262 = pneg %p157
        %p263 = pneg %p188
        %p264 = pneg %p185
        %s265 = sand.u32 %s175, 1
        %s266 = scalar_lea.sflag [#allocation3], %s265
        %s267 = sand.u32 %s175, 1
        %s268 = smul.addr %s267, 4
        %s269 = scalar_lea.vmem [#allocation2], %s268
        %s270 = smul.u32 2, %s25
        %p271 = scmp.lt.s32.totalorder %s24, 1
        %s272 = scalar_select %p271, %s24, 1
        %p273 = scmp.lt.s32.totalorder %s270, 1
        %s274 = scalar_select %p273, %s270, 1
        %s275 = smul.addr %s272, 2
        %s276 = sadd.s32 %s274, %s275
        %s277 = smul.addr %s276, 4
        %s278 = scalar_lea.vmem %s0, %s277
        %s279 = smul.u32 2, %s25
        %s280 = smul.u32 2, %s25
        %v281 = vld [vmem:[%s1] sm:$0xff]
        %v282 = vmul.f32 %v281, 0.001953125
        %v283 = vmul.f32 %v282, %v282
        %285 = vrot.lane.b32.xlu0 %v283, 1
        %v286 = vpop.permute.xlu0 %285
        %v288 = vsub.f32 %v282, %v286
        %v289 = vmax.f32 %v288, 0.0
        %v290 = vld [vmem:[%s278] sm:$0xff]
        %v291 = vunpack.c.l.bf16 %v290
        %v292 = vunpack.c.h.bf16 %v290
        %294 = vset.pattern.permute.xlu0 0
        %295 = vperm.xlu0 %294, %v282
        %v296 = vpop.permute.xlu0 %295
        %v298 = vsub.f32 %v291, %v296
        %v299 = vsub.f32 %v292, %v296
        %v300 = vadd.f32 %v289, 1e-05
        %v301 = vrsqrt.pop %v300
        %303 = vset.pattern.permute.xlu0 1
        %304 = vperm.xlu0 %303, %v301
        %v305 = vpop.permute.xlu0 %304
        %v307 = vmul.f32 %v298, %v305
        %v308 = vmul.f32 %v299, %v305
        %v309 = vld [vmem:[%s2] sm:$0xff]
        %311 = vset.pattern.permute.xlu0 0
        %312 = vperm.xlu0 %311, %v309
        %v313 = vpop.permute.xlu0 %312
        %v315 = vmul.f32 %v307, %v313
        %v316 = vmul.f32 %v308, %v313
        %v317 = vld [vmem:[%s3] sm:$0xff]
        %319 = vset.pattern.permute.xlu0 0
        %320 = vperm.xlu0 %319, %v317
        %v321 = vpop.permute.xlu0 %320
        %v323 = vadd.f32 %v315, %v321
        %v324 = vadd.f32 %v316, %v321
        %vm325 = vcmp.ge.f32.partialorder %v323, 0.0
        %vm326 = vcmp.ge.f32.partialorder %v324, 0.0
        %v327 = vmul.f32 %v323, 0.01
        %v328 = vmul.f32 %v324, 0.01
        %v329 = vsel %vm325, %v323, %v327
        %v330 = vsel %vm326, %v324, %v328
        %v331 = vld [vmem:[%s4] sm:$0x3]
        %v332 = vld [vmem:[%s5] sm:$0x3]
        %334 = vset.pattern.permute.xlu0 0
        %335 = vperm.xlu0 %334, %v332
        %v336 = vpop.permute.xlu0 %335
        %vm338 = vcmask 64512
        %v340 = vsel %vm338, %v331, 0
        %342 = vmatprep.subr.mxu0 0.0
        %343 = vmatpush1.msra.mxu0 0.0
        %344 = vmatprep.subr.mxu0 0.0
        %345 = vmatpush1.msra.mxu0 0.0
        %346 = vmatprep.subr.mxu0 0.0
        %347 = vmatpush1.msra.mxu0 0.0
        %348 = vmatprep.subr.mxu0 0.0
        %349 = vmatpush1.msra.mxu0 0.0
        %350 = vmatprep.subr.mxu0 0.0
        %351 = vmatpush1.msra.mxu0 0.0
        %352 = vmatprep.subr.mxu0 0.0
        %353 = vmatpush1.msra.mxu0 0.0
        %354 = vmatprep.subr.mxu0 0.0
        %355 = vmatpush1.msra.mxu0 0.0
        %356 = vmatprep.subr.mxu0 0.0
        %357 = vmatpush1.msra.mxu0 0.0
        %358 = vmatprep.subr.mxu0 0.0
        %359 = vmatpush1.msra.mxu0 0.0
        %360 = vmatprep.subr.mxu0 0.0
        %361 = vmatpush1.msra.mxu0 0.0
        %362 = vmatprep.subr.mxu0 0.0
        %363 = vmatpush1.msra.mxu0 0.0
        %364 = vmatprep.subr.mxu0 0.0
        %365 = vmatpush1.msra.mxu0 0.0
        %366 = vmatprep.subr.mxu0 0.0
        %367 = vmatpush1.msra.mxu0 0.0
        %368 = vmatprep.subr.mxu0 0.0
        %369 = vmatpush1.msra.mxu0 0.0
        %370 = vmatprep.subr.mxu0 0.0
        %371 = vmatpush1.msra.mxu0 0.0
        %372 = vmatprep.subr.mxu0 %v330
        %373 = vmatpush1.msra.mxu0 %v329
        %374 = vmatprep.subr.mxu0 0.0
        %375 = vmatpush2.msra.mxu0 0.0
        %376 = vmatprep.subr.mxu0 0.0
        %377 = vmatpush2.msra.mxu0 0.0
        %378 = vmatprep.subr.mxu0 0.0
        %379 = vmatpush2.msra.mxu0 0.0
        %380 = vmatprep.subr.mxu0 0.0
        %381 = vmatpush2.msra.mxu0 0.0
        %382 = vmatprep.subr.mxu0 0.0
        %383 = vmatpush2.msra.mxu0 0.0
        %384 = vmatprep.subr.mxu0 0.0
        %385 = vmatpush2.msra.mxu0 0.0
        %386 = vmatprep.subr.mxu0 0.0
        %387 = vmatpush2.msra.mxu0 0.0
        %388 = vmatprep.subr.mxu0 0.0
        %389 = vmatpush2.msra.mxu0 0.0
        %390 = vmatprep.subr.mxu0 0.0
        %391 = vmatpush2.msra.mxu0 0.0
        %392 = vmatprep.subr.mxu0 0.0
        %393 = vmatpush2.msra.mxu0 0.0
        %394 = vmatprep.subr.mxu0 0.0
        %395 = vmatpush2.msra.mxu0 0.0
        %396 = vmatprep.subr.mxu0 0.0
        %397 = vmatpush2.msra.mxu0 0.0
        %398 = vmatprep.subr.mxu0 0.0
        %399 = vmatpush2.msra.mxu0 0.0
        %400 = vmatprep.subr.mxu0 0.0
        %401 = vmatpush2.msra.mxu0 0.0
        %402 = vmatprep.subr.mxu0 0.0
        %403 = vmatpush2.msra.mxu0 0.0
        %404 = vmatprep.subr.mxu0 0.0
        %405 = vmatpush2.msra.mxu0 0.0
        %406 = vmatprep.mubr.f32.mxu0 0.0
        %407 = vmatmul.mubr.f32.gmra.mxu0 %v340
        %v408 = vpop.f32.mrf.mxu0
        %v409 = vadd.f32 %v336, %v408
        %v410 = vpop.f32.mrf.mxu0
        %v411 = vadd.f32 %v336, %v410
        %412 = vdwg.mxu0
        %v413 = vxor.u32 %v409, 2147483648
        %v414 = vxor.u32 %v411, 2147483648
        %v415 = vmul.f32 %v413, 1.442695
        %v416 = vpow.pop %v415
        %v417 = vmul.f32 %v414, 1.442695
        %v418 = vpow.pop %v417
        %v419 = vadd.f32 %v416, 1.0
        %v420 = vadd.f32 %v418, 1.0
        %v421 = vrcp.pop %v419
        %v422 = vmul.f32 1.0, %v421
        %v423 = vrcp.pop %v420
        %v424 = vmul.f32 1.0, %v423
        %v427 = vcombine.low %v422, %v424
        %v429 = vunpack.c.l.s4 1983009808
        %v430 = vunpack.c.0.s8 %v429
        %v431 = vlaneseq
        %v432 = vshrl.u32 %v431, 7
        %v433 = vsub.s32 %v430, %v432
        %v434 = vrot.slane %v427, %v433
        %436 = vst [vmem:[%s269] sm:$0xf] %v434
        %s437 = sand.u32 %s175, 1
        %s438 = scalar_lea.sflag [#allocation3], %s437
        %s439 = sand.u32 %s175, 1
        %s440 = smul.addr %s439, 4
        %s441 = scalar_lea.vmem [#allocation2], %s440
        // Predicated region
        $region45: #{mlp_3layer_forward.5} parent=43 // pred_check
          %p442 = pneg %p185
        $region46: #{mlp_3layer_forward.5} parent=43 // pred_check_branch
          %444 = sbr.rel (%p442) target = $region48
        $region47: #{mlp_3layer_forward.5} parent=43 // pred_region
          %s445 = smul.u32 2, %s25
          %s447 = ssub.s32 64, 64
          %448 = vsyncadd %s438, %s447
          %s449 = smul.addr %s24, 2
          %s450 = sadd.s32 %s445, %s449
          %s451 = smul.addr %s450, 32
          %s452 = scalar_lea.hbm %s6, %s451
          %s454 = sshll.u32 %s441, 4
          %s455 = int_to_ptr.vmem [resolvable:$true] %s454
          %457 = dma.vmem_to_hbm [thread:$0]  %s455, 64, %s452, %s438
        $region48: #{mlp_3layer_forward.5} parent=43 // pred_fallthru
          _
      $region44: #{mlp_3layer_forward.5} parent=5 // pred_fallthru
        _
      %p458 = scmp.le.s32.totalorder 2, %s15
      // Predicated region
      $region49: #{mlp_3layer_forward.5} parent=5 // pred_check
        %p459 = pneg %p458
      $region50: #{mlp_3layer_forward.5} parent=5 // pred_check_branch
        %461 = sbr.rel (%p459) target = $region52
      $region51: #{mlp_3layer_forward.5} parent=5 // pred_region
        %s462 = ssub.s32 %s15, 2
        // Predicated region
        $region53: #{mlp_3layer_forward.5} parent=51 // pred_check
          %p463 = pneg %p191
        $region54: #{mlp_3layer_forward.5} parent=51 // pred_check_branch
          %465 = sbr.rel (%p463) target = $region56
        $region55: #{mlp_3layer_forward.5} parent=51 // pred_region
          %s466 = sand.u32 %s176, 1
          %s467 = scalar_lea.sflag [#allocation3], %s466
          %s468 = sand.u32 %s176, 1
          %s469 = smul.addr %s468, 4
          %s470 = scalar_lea.vmem [#allocation2], %s469
          %471 = dma.done %s467, 64
        $region56: #{mlp_3layer_forward.5} parent=51 // pred_fallthru
          _
      $region52: #{mlp_3layer_forward.5} parent=5 // pred_fallthru
        _
    $region6: #{mlp_3layer_forward.5} parent=1 // loop_footer
      %s19 = sadd.s32 1, %s15
    $region7: #{mlp_3layer_forward.5} parent=1 // loop_footer_branch
      %14 = sbr.rel target = $region3
    $region8: #{mlp_3layer_forward.5} parent=1 // loop_exit
      _
    %472 = vsyncpa [#allocation3], 1
    %s473 = scalar_lea.sflag [#allocation3], 1
    %474 = vsyncpa %s473, 1

// kernel: mlp_3layer_forward.3
$region0: #{mlp_3layer_forward.3}
  #allocation0 [shape = 'u32[]', space=smem, size = 0x4, offset = 0x4, fixed_abs, tag = 'smem constant byte address 0x4 - core index']
  #allocation1 [shape = 'u32[144,128]{1,0:T(1,128)}', space=vmem, size = 0x12000, scoped, tag = 'internal scratch']
  %s0 = inlined_call_operand.vmem [shape: f32[2,128,256], index: 0, kind: input, shape index: {}]
  %s1 = inlined_call_operand.vmem [shape: f32[32,128], index: 1, kind: input, shape index: {}]
  %s2 = inlined_call_operand.vmem [shape: bf16[2,32,256], index: 2, kind: output, shape index: {0}]
  %s3 = inlined_call_operand.vmem [shape: f32[2,32,2], index: 3, kind: output, shape index: {1}]
  %4 = xla_tuple %s2, %s3
  %s5 = sld [smem:[#allocation0]]
  $region53: #{mlp_3layer_forward.3} parent=0
    _
  %s7 = ssub.s32 1, %s5
  %s8 = scalar_select 0, %s7, %s5
  loop: start=0, step=1, limit=4
  $region2: #{mlp_3layer_forward.3} parent=0 // loop_pre_header
    _
  $region3: #{mlp_3layer_forward.3} parent=0 // loop_header
    %s10 = sphi 0, %s14
    %p11 = scmp.ge.s32.totalorder %s10, 4
    %s17 = sphi 0, %s29
    %s18 = sphi 0, %s25
    %s19 = sphi 0, %s17
    %s20 = sphi 0, %s18
    %s21 = sphi 0, %s19
    %s22 = sphi 0, %s20
    %s34 = sphi 0, %s36
    %s37 = sphi 0, %s34
    %s38 = sphi 0, %s37
    %s54 = sphi 0, %s38
    %s58 = sphi 0, %s58
    %s60 = sphi 0, %s58
    %s61 = sphi 0, %s60
    %s75 = sphi 0, %s61
    %s83 = sphi 0, %s85
    %s86 = sphi 0, %s83
    %s87 = sphi 0, %s86
    %s103 = sphi 0, %s87
    %s109 = sphi 0, %s111
    %s112 = sphi 0, %s109
    %s113 = sphi 0, %s112
    %s129 = sphi 0, %s113
  $region4: #{mlp_3layer_forward.3} parent=0 // loop_header_branch
    %13 = sbr.rel (%p11) target = $region8
  $region5: #{mlp_3layer_forward.3} parent=0 // loop_body
    %s15 = ssub.s32 %s10, 1
    %s16 = ssub.s32 %s10, 2
    %s23 = sadd.s32 1, %s18
    %p24 = scmp.ge.s32.totalorder %s23, 1
    %s25 = scalar_select %p24, 0, %s23
    %s26 = sadd.s32 1, %s17
    %s27 = scalar_select %p24, %s26, %s17
    %p28 = scmp.ge.s32.totalorder %s27, 2
    %s29 = scalar_select %p28, 0, %s27
    %s30 = ssub.s32 %s17, %s29
    %s31 = ssub.s32 %s18, %s25
    %s32 = sor.u32 %s30, %s31
    %p33 = scmp.eq.s32.totalorder %s32, 0
    %s35 = sadd.s32 %s34, 1
    %s36 = scalar_select %p33, %s34, %s35
    %p39 = pneg %p33
    %p40 = scmp.eq.s32.totalorder %s10, 1
    %p41 = por %p39, %p40
    %p42 = scmp.ne.s32.totalorder %s34, %s37
    %p43 = scmp.eq.s32.totalorder %s10, 0
    %p44 = por %p42, %p43
    %p45 = scmp.ne.s32.totalorder %s34, %s37
    %p46 = scmp.eq.s32.totalorder %s15, 1
    %p47 = por %p45, %p46
    %p48 = scmp.ne.s32.totalorder %s37, %s38
    %p49 = scmp.eq.s32.totalorder %s15, 0
    %p50 = por %p48, %p49
    %p51 = scmp.ne.s32.totalorder %s37, %s38
    %p52 = scmp.eq.s32.totalorder %s16, 1
    %p53 = por %p51, %p52
    %p55 = scmp.ne.s32.totalorder %s38, %s54
    %p56 = scmp.eq.s32.totalorder %s16, 0
    %p57 = por %p55, %p56
    %s59 = sadd.s32 %s58, 1
    %p62 = scmp.eq.s32.totalorder %s10, 1
    %p63 = scmp.ne.s32.totalorder %s58, %s60
    %p64 = scmp.eq.s32.totalorder %s10, 0
    %p65 = por %p63, %p64
    %p66 = scmp.ne.s32.totalorder %s58, %s60
    %p67 = scmp.eq.s32.totalorder %s15, 1
    %p68 = por %p66, %p67
    %p69 = scmp.ne.s32.totalorder %s60, %s61
    %p70 = scmp.eq.s32.totalorder %s15, 0
    %p71 = por %p69, %p70
    %p72 = scmp.ne.s32.totalorder %s60, %s61
    %p73 = scmp.eq.s32.totalorder %s16, 1
    %p74 = por %p72, %p73
    %p76 = scmp.ne.s32.totalorder %s61, %s75
    %p77 = scmp.eq.s32.totalorder %s16, 0
    %p78 = por %p76, %p77
    %s79 = ssub.s32 %s17, %s29
    %s80 = ssub.s32 %s18, %s25
    %s81 = sor.u32 %s79, %s80
    %p82 = scmp.eq.s32.totalorder %s81, 0
    %s84 = sadd.s32 %s83, 1
    %s85 = scalar_select %p82, %s83, %s84
    %p88 = pneg %p82
    %p89 = scmp.eq.s32.totalorder %s10, 1
    %p90 = por %p88, %p89
    %p91 = scmp.ne.s32.totalorder %s83, %s86
    %p92 = scmp.eq.s32.totalorder %s10, 0
    %p93 = por %p91, %p92
    %p94 = scmp.ne.s32.totalorder %s83, %s86
    %p95 = scmp.eq.s32.totalorder %s15, 1
    %p96 = por %p94, %p95
    %p97 = scmp.ne.s32.totalorder %s86, %s87
    %p98 = scmp.eq.s32.totalorder %s15, 0
    %p99 = por %p97, %p98
    %p100 = scmp.ne.s32.totalorder %s86, %s87
    %p101 = scmp.eq.s32.totalorder %s16, 1
    %p102 = por %p100, %p101
    %p104 = scmp.ne.s32.totalorder %s87, %s103
    %p105 = scmp.eq.s32.totalorder %s16, 0
    %p106 = por %p104, %p105
    %s107 = ssub.s32 %s17, %s29
    %p108 = scmp.eq.s32.totalorder %s107, 0
    %s110 = sadd.s32 %s109, 1
    %s111 = scalar_select %p108, %s109, %s110
    %p114 = pneg %p108
    %p115 = scmp.eq.s32.totalorder %s10, 1
    %p116 = por %p114, %p115
    %p117 = scmp.ne.s32.totalorder %s109, %s112
    %p118 = scmp.eq.s32.totalorder %s10, 0
    %p119 = por %p117, %p118
    %p120 = scmp.ne.s32.totalorder %s109, %s112
    %p121 = scmp.eq.s32.totalorder %s15, 1
    %p122 = por %p120, %p121
    %p123 = scmp.ne.s32.totalorder %s112, %s113
    %p124 = scmp.eq.s32.totalorder %s15, 0
    %p125 = por %p123, %p124
    %p126 = scmp.ne.s32.totalorder %s112, %s113
    %p127 = scmp.eq.s32.totalorder %s16, 1
    %p128 = por %p126, %p127
    %p130 = scmp.ne.s32.totalorder %s113, %s129
    %p131 = scmp.eq.s32.totalorder %s16, 0
    %p132 = por %p130, %p131
    %p133 = scmp.le.s32.totalorder 1, %s10
    %p134 = scmp.lt.s32.totalorder %s10, 3
    %p135 = pnand %p133, %p134
    %p136 = pneg %p135
    // Predicated region
    $region9: #{mlp_3layer_forward.3} parent=5 // pred_check
      _
    $region10: #{mlp_3layer_forward.3} parent=5 // pred_check_branch
      %138 = sbr.rel (%p135) target = $region12
    $region11: #{mlp_3layer_forward.3} parent=5 // pred_region
      %s139 = ssub.s32 %s10, 1
      // Predicated region
      $region13: #{mlp_3layer_forward.3} parent=11 // pred_check
        %p140 = pneg %p71
      $region14: #{mlp_3layer_forward.3} parent=11 // pred_check_branch
        %142 = sbr.rel (%p140) target = $region16
      $region15: #{mlp_3layer_forward.3} parent=11 // pred_region
        _
      $region16: #{mlp_3layer_forward.3} parent=11 // pred_fallthru
        _
    $region12: #{mlp_3layer_forward.3} parent=5 // pred_fallthru
      _
    %p143 = scmp.lt.s32.totalorder %s10, 2
    // Predicated region
    $region17: #{mlp_3layer_forward.3} parent=5 // pred_check
      %p144 = pneg %p143
    $region18: #{mlp_3layer_forward.3} parent=5 // pred_check_branch
      %146 = sbr.rel (%p144) target = $region20
    $region19: #{mlp_3layer_forward.3} parent=5 // pred_region
      // Predicated region
      $region21: #{mlp_3layer_forward.3} parent=19 // pred_check
        %p147 = pneg %p44
      $region22: #{mlp_3layer_forward.3} parent=19 // pred_check_branch
        %149 = sbr.rel (%p147) target = $region24
      $region23: #{mlp_3layer_forward.3} parent=19 // pred_region
        %s150 = smul.u32 2, %s18
        %p151 = scmp.lt.s32.totalorder %s17, 1
        %s152 = scalar_select %p151, %s17, 1
        %p153 = scmp.lt.s32.totalorder %s150, 1
        %s154 = scalar_select %p153, %s150, 1
        %s155 = smul.addr %s152, 32
        %s156 = sadd.s32 %s154, %s155
        %s157 = smul.addr %s156, 8
        %s158 = scalar_lea.vmem %s0, %s157
        %s159 = smul.u32 2, %s18
      $region24: #{mlp_3layer_forward.3} parent=19 // pred_fallthru
        _
    $region20: #{mlp_3layer_forward.3} parent=5 // pred_fallthru
      _
    %p160 = scmp.le.s32.totalorder 1, %s10
    %p161 = scmp.lt.s32.totalorder %s10, 3
    %p162 = pnand %p160, %p161
    %p163 = pneg %p162
    // Predicated region
    $region25: #{mlp_3layer_forward.3} parent=5 // pred_check
      _
    $region26: #{mlp_3layer_forward.3} parent=5 // pred_check_branch
      %165 = sbr.rel (%p162) target = $region28
    $region27: #{mlp_3layer_forward.3} parent=5 // pred_region
      %s166 = ssub.s32 %s10, 1
      %s167 = smul.u32 2, %s20
      %p168 = scmp.lt.s32.totalorder %s19, 1
      %s169 = scalar_select %p168, %s19, 1
      %p170 = scmp.lt.s32.totalorder %s167, 1
      %s171 = scalar_select %p170, %s167, 1
      %s172 = smul.addr %s169, 32
      %s173 = sadd.s32 %s171, %s172
      %s174 = smul.addr %s173, 8
      %s175 = scalar_lea.vmem %s0, %s174
      %p176 = pneg %p50
      %p177 = pneg %p47
      %p178 = pneg %p71
      %p179 = pneg %p68
      %p180 = pneg %p99
      %p181 = pneg %p96
      %s182 = smul.u32 2, %s20
      %p183 = scmp.lt.s32.totalorder %s19, 1
      %s184 = scalar_select %p183, %s19, 1
      %p185 = scmp.lt.s32.totalorder %s182, 1
      %s186 = scalar_select %p185, %s182, 1
      %s187 = smul.addr %s184, 8
      %s188 = sadd.s32 %s186, %s187
      %s189 = smul.addr %s188, 4
      %s190 = scalar_lea.vmem %s2, %s189
      %p191 = pneg %p125
      %p192 = pneg %p122
      %p193 = scmp.lt.s32.totalorder %s19, 1
      %s194 = scalar_select %p193, %s19, 1
      %s195 = smul.addr %s194, 4
      %s196 = smul.addr %s195, 8
      %s197 = scalar_lea.vmem %s3, %s196
      %s198 = smul.u32 2, %s20
      %p199 = scmp.lt.s32.totalorder %s19, 1
      %s200 = scalar_select %p199, %s19, 1
      %p201 = scmp.lt.s32.totalorder %s198, 1
      %s202 = scalar_select %p201, %s198, 1
      %s203 = smul.addr %s200, 32
      %s204 = sadd.s32 %s202, %s203
      %s205 = smul.addr %s204, 8
      %s206 = scalar_lea.vmem %s0, %s205
      %s207 = smul.u32 2, %s20
      %s208 = smul.u32 2, %s20
      %p209 = scmp.lt.s32.totalorder %s19, 1
      %s210 = scalar_select %p209, %s19, 1
      %p211 = scmp.lt.s32.totalorder %s208, 1
      %s212 = scalar_select %p211, %s208, 1
      %s213 = smul.addr %s210, 8
      %s214 = sadd.s32 %s212, %s213
      %s215 = smul.addr %s214, 4
      %s216 = scalar_lea.vmem %s2, %s215
      %s217 = smul.u32 2, %s20
      %p218 = scmp.lt.s32.totalorder %s19, 1
      %s219 = scalar_select %p218, %s19, 1
      %s220 = smul.addr %s219, 4
      %s221 = smul.addr %s220, 8
      %s222 = scalar_lea.vmem %s3, %s221
      %p223 = scmp.eq.s32.totalorder %s20, 0
      // Predicated region
      $region29: #{mlp_3layer_forward.3} parent=27 // pred_check
        %p224 = pneg %p223
      $region30: #{mlp_3layer_forward.3} parent=27 // pred_check_branch
        %226 = sbr.rel (%p224) target = $region32
      $region31: #{mlp_3layer_forward.3} parent=27 // pred_region
        %vm227 = vcmask 15360
        %228 = vst.msk [vmem:[%s222] sm:$0xff] %vm227, 0.0
        %229 = vst.msk [vmem:[%s222 + $0x8] sm:$0xff] %vm227, 0.0
        %230 = vst.msk [vmem:[%s222 + $0x10] sm:$0xff] %vm227, 0.0
        %231 = vst.msk [vmem:[%s222 + $0x18] sm:$0xff] %vm227, 0.0
      $region32: #{mlp_3layer_forward.3} parent=27 // pred_fallthru
        _
      %v232 = vld [vmem:[%s206] sm:$0xff]
      %v233 = vld [vmem:[%s206 + $0x8] sm:$0xff]
      %v234 = vld [vmem:[%s206 + $0x10] sm:$0xff]
      %v235 = vld [vmem:[%s206 + $0x18] sm:$0xff]
      %v236 = vld [vmem:[%s206 + $0x20] sm:$0xff]
      %v237 = vld [vmem:[%s206 + $0x28] sm:$0xff]
      %v238 = vld [vmem:[%s206 + $0x30] sm:$0xff]
      %v239 = vld [vmem:[%s206 + $0x38] sm:$0xff]
      %v240 = vld [vmem:[%s206 + $0x40] sm:$0xff]
      %v241 = vld [vmem:[%s206 + $0x48] sm:$0xff]
      %v242 = vld [vmem:[%s206 + $0x50] sm:$0xff]
      %v243 = vld [vmem:[%s206 + $0x58] sm:$0xff]
      %v244 = vld [vmem:[%s206 + $0x60] sm:$0xff]
      %v245 = vld [vmem:[%s206 + $0x68] sm:$0xff]
      %v246 = vld [vmem:[%s206 + $0x70] sm:$0xff]
      %v247 = vld [vmem:[%s206 + $0x78] sm:$0xff]
      %v248 = vld [vmem:[%s206 + $0x80] sm:$0xff]
      %v249 = vld [vmem:[%s206 + $0x88] sm:$0xff]
      %v250 = vld [vmem:[%s206 + $0x90] sm:$0xff]
      %v251 = vld [vmem:[%s206 + $0x98] sm:$0xff]
      %v252 = vld [vmem:[%s206 + $0xa0] sm:$0xff]
      %v253 = vld [vmem:[%s206 + $0xa8] sm:$0xff]
      %v254 = vld [vmem:[%s206 + $0xb0] sm:$0xff]
      %v255 = vld [vmem:[%s206 + $0xb8] sm:$0xff]
      %v256 = vld [vmem:[%s206 + $0xc0] sm:$0xff]
      %v257 = vld [vmem:[%s206 + $0xc8] sm:$0xff]
      %v258 = vld [vmem:[%s206 + $0xd0] sm:$0xff]
      %v259 = vld [vmem:[%s206 + $0xd8] sm:$0xff]
      %v260 = vld [vmem:[%s206 + $0xe0] sm:$0xff]
      %v261 = vld [vmem:[%s206 + $0xe8] sm:$0xff]
      %v262 = vld [vmem:[%s206 + $0xf0] sm:$0xff]
      %v263 = vld [vmem:[%s206 + $0xf8] sm:$0xff]
      %v264 = vld [vmem:[%s1] sm:$0xff]
      %v265 = vld [vmem:[%s1 + $0x8] sm:$0xff]
      %v266 = vld [vmem:[%s1 + $0x10] sm:$0xff]
      %v267 = vld [vmem:[%s1 + $0x18] sm:$0xff]
      %268 = vmatprep.subr.mxu0 %v263
      %269 = vmatpush1.msra.mxu0 %v262
      %270 = vmatprep.subr.mxu0 %v261
      %271 = vmatpush1.msra.mxu0 %v260
      %272 = vmatprep.subr.mxu0 %v259
      %273 = vmatpush1.msra.mxu0 %v258
      %274 = vmatprep.subr.mxu0 %v257
      %275 = vmatpush1.msra.mxu0 %v256
      %276 = vmatprep.subr.mxu0 %v255
      %277 = vmatpush1.msra.mxu0 %v254
      %278 = vmatprep.subr.mxu0 %v253
      %279 = vmatpush1.msra.mxu0 %v252
      %280 = vmatprep.subr.mxu0 %v251
      %281 = vmatpush1.msra.mxu0 %v250
      %282 = vmatprep.subr.mxu0 %v249
      %283 = vmatpush1.msra.mxu0 %v248
      %284 = vmatprep.subr.mxu0 %v247
      %285 = vmatpush1.msra.mxu0 %v246
      %286 = vmatprep.subr.mxu0 %v245
      %287 = vmatpush1.msra.mxu0 %v244
      %288 = vmatprep.subr.mxu0 %v243
      %289 = vmatpush1.msra.mxu0 %v242
      %290 = vmatprep.subr.mxu0 %v241
      %291 = vmatpush1.msra.mxu0 %v240
      %292 = vmatprep.subr.mxu0 %v239
      %293 = vmatpush1.msra.mxu0 %v238
      %294 = vmatprep.subr.mxu0 %v237
      %295 = vmatpush1.msra.mxu0 %v236
      %296 = vmatprep.subr.mxu0 %v235
      %297 = vmatpush1.msra.mxu0 %v234
      %298 = vmatprep.subr.mxu0 %v233
      %299 = vmatpush1.msra.mxu0 %v232
      %300 = vmatprep.subr.mxu0 0.0
      %301 = vmatpush2.msra.mxu0 0.0
      %302 = vmatprep.subr.mxu0 0.0
      %303 = vmatpush2.msra.mxu0 0.0
      %304 = vmatprep.subr.mxu0 0.0
      %305 = vmatpush2.msra.mxu0 0.0
      %306 = vmatprep.subr.mxu0 0.0
      %307 = vmatpush2.msra.mxu0 0.0
      %308 = vmatprep.subr.mxu0 0.0
      %309 = vmatpush2.msra.mxu0 0.0
      %310 = vmatprep.subr.mxu0 0.0
      %311 = vmatpush2.msra.mxu0 0.0
      %312 = vmatprep.subr.mxu0 0.0
      %313 = vmatpush2.msra.mxu0 0.0
      %314 = vmatprep.subr.mxu0 0.0
      %315 = vmatpush2.msra.mxu0 0.0
      %316 = vmatprep.subr.mxu0 0.0
      %317 = vmatpush2.msra.mxu0 0.0
      %318 = vmatprep.subr.mxu0 0.0
      %319 = vmatpush2.msra.mxu0 0.0
      %320 = vmatprep.subr.mxu0 0.0
      %321 = vmatpush2.msra.mxu0 0.0
      %322 = vmatprep.subr.mxu0 0.0
      %323 = vmatpush2.msra.mxu0 0.0
      %324 = vmatprep.subr.mxu0 0.0
      %325 = vmatpush2.msra.mxu0 0.0
      %326 = vmatprep.subr.mxu0 0.0
      %327 = vmatpush2.msra.mxu0 0.0
      %328 = vmatprep.subr.mxu0 0.0
      %329 = vmatpush2.msra.mxu0 0.0
      %330 = vmatprep.subr.mxu0 0.0
      %331 = vmatpush2.msra.mxu0 0.0
      %332 = vmatprep.mubr.f32.mxu0 0.0
      %333 = vmatmul.mubr.f32.gmra.mxu0 %v264
      %v334 = vpop.f32.mrf.mxu0
      %v335 = vadd.f32 0.0, %v334
      %v336 = vpop.f32.mrf.mxu0
      %v337 = vadd.f32 0.0, %v336
      %338 = vmatprep.mubr.f32.mxu0 0.0
      %339 = vmatmul.mubr.f32.gmra.mxu0 %v265
      %v340 = vpop.f32.mrf.mxu0
      %v341 = vadd.f32 0.0, %v340
      %v342 = vpop.f32.mrf.mxu0
      %v343 = vadd.f32 0.0, %v342
      %344 = vmatprep.mubr.f32.mxu0 0.0
      %345 = vmatmul.mubr.f32.gmra.mxu0 %v266
      %v346 = vpop.f32.mrf.mxu0
      %v347 = vadd.f32 0.0, %v346
      %v348 = vpop.f32.mrf.mxu0
      %v349 = vadd.f32 0.0, %v348
      %350 = vmatprep.mubr.f32.mxu0 0.0
      %351 = vmatmul.mubr.f32.gmra.mxu0 %v267
      %v352 = vpop.f32.mrf.mxu0
      %v353 = vadd.f32 0.0, %v352
      %v354 = vpop.f32.mrf.mxu0
      %v355 = vadd.f32 0.0, %v354
      %356 = vdwg.mxu0
      %v357 = vpack.c.bf16 %v341, %v335
      %v358 = vpack.c.bf16 %v343, %v337
      %v359 = vpack.c.bf16 %v353, %v347
      %v360 = vpack.c.bf16 %v355, %v349
      %v365 = vunpack.c.l.b16 %v357
      %v366 = vunpack.c.l.b16 %v358
      %v367 = vunpack.c.h.b16 %v357
      %v368 = vunpack.c.h.b16 %v358
      %v369 = vunpack.c.l.b16 %v359
      %v370 = vunpack.c.l.b16 %v360
      %v371 = vunpack.c.h.b16 %v359
      %v372 = vunpack.c.h.b16 %v360
      %v373 = vpack.c.b16 %v366, %v365
      %v374 = vpack.c.b16 %v368, %v367
      %v375 = vpack.c.b16 %v370, %v369
      %v376 = vpack.c.b16 %v372, %v371
      %381 = vst [vmem:[%s216] sm:$0xff] %v373
      %382 = vst [vmem:[%s216 + $0x8] sm:$0xff] %v374
      %383 = vst [vmem:[%s216 + $0x10] sm:$0xff] %v375
      %384 = vst [vmem:[%s216 + $0x18] sm:$0xff] %v376
      %v385 = vld [vmem:[%s222] sm:$0xff]
      %v386 = vld [vmem:[%s222 + $0x8] sm:$0xff]
      %v387 = vld [vmem:[%s222 + $0x10] sm:$0xff]
      %v388 = vld [vmem:[%s222 + $0x18] sm:$0xff]
      %v389 = vadd.f32 %v335, %v337
      %390 = vadd.xlane.f32.xlu0 %v389
      %v391 = vpop.xlane.xlu0 %390
      %v392 = vadd.f32 %v341, %v343
      %393 = vadd.xlane.f32.xlu0 %v392
      %v394 = vpop.xlane.xlu0 %393
      %v395 = vadd.f32 %v347, %v349
      %396 = vadd.xlane.f32.xlu0 %v395
      %v397 = vpop.xlane.xlu0 %396
      %v398 = vadd.f32 %v353, %v355
      %399 = vadd.xlane.f32.xlu0 %v398
      %v400 = vpop.xlane.xlu0 %399
      %v401 = vmul.f32 %v335, %v335
      %v402 = vmul.f32 %v337, %v337
      %v403 = vmul.f32 %v341, %v341
      %v404 = vmul.f32 %v343, %v343
      %v405 = vmul.f32 %v347, %v347
      %v406 = vmul.f32 %v349, %v349
      %v407 = vmul.f32 %v353, %v353
      %v408 = vmul.f32 %v355, %v355
      %v409 = vadd.f32 %v401, %v402
      %410 = vadd.xlane.f32.xlu0 %v409
      %v411 = vpop.xlane.xlu0 %410
      %v412 = vadd.f32 %v403, %v404
      %413 = vadd.xlane.f32.xlu0 %v412
      %v414 = vpop.xlane.xlu0 %413
      %v415 = vadd.f32 %v405, %v406
      %416 = vadd.xlane.f32.xlu0 %v415
      %v417 = vpop.xlane.xlu0 %416
      %v418 = vadd.f32 %v407, %v408
      %419 = vadd.xlane.f32.xlu0 %v418
      %v420 = vpop.xlane.xlu0 %419
      %vm421 = vcmask 7168
      %v422 = vsel %vm421, %v391, %v411
      %v423 = vsel %vm421, %v394, %v414
      %v424 = vsel %vm421, %v397, %v417
      %v425 = vsel %vm421, %v400, %v420
      %v426 = vadd.f32 %v385, %v422
      %v427 = vadd.f32 %v386, %v423
      %v428 = vadd.f32 %v387, %v424
      %v429 = vadd.f32 %v388, %v425
      %vm430 = vcmask 15360
      %431 = vst.msk [vmem:[%s222] sm:$0xff] %vm430, %v426
      %432 = vst.msk [vmem:[%s222 + $0x8] sm:$0xff] %vm430, %v427
      %433 = vst.msk [vmem:[%s222 + $0x10] sm:$0xff] %vm430, %v428
      %434 = vst.msk [vmem:[%s222 + $0x18] sm:$0xff] %vm430, %v429
      %s435 = smul.u32 2, %s20
      %p436 = scmp.lt.s32.totalorder %s19, 1
      %s437 = scalar_select %p436, %s19, 1
      %p438 = scmp.lt.s32.totalorder %s435, 1
      %s439 = scalar_select %p438, %s435, 1
      %s440 = smul.addr %s437, 8
      %s441 = sadd.s32 %s439, %s440
      %s442 = smul.addr %s441, 4
      %s443 = scalar_lea.vmem %s2, %s442
      %p444 = scmp.lt.s32.totalorder %s19, 1
      %s445 = scalar_select %p444, %s19, 1
      %s446 = smul.addr %s445, 4
      %s447 = smul.addr %s446, 8
      %s448 = scalar_lea.vmem %s3, %s447
      // Predicated region
      $region33: #{mlp_3layer_forward.3} parent=27 // pred_check
        %p449 = pneg %p96
      $region34: #{mlp_3layer_forward.3} parent=27 // pred_check_branch
        %451 = sbr.rel (%p449) target = $region36
      $region35: #{mlp_3layer_forward.3} parent=27 // pred_region
        %s452 = smul.u32 2, %s20
      $region36: #{mlp_3layer_forward.3} parent=27 // pred_fallthru
        _
      // Predicated region
      $region37: #{mlp_3layer_forward.3} parent=27 // pred_check
        %p453 = pneg %p122
      $region38: #{mlp_3layer_forward.3} parent=27 // pred_check_branch
        %455 = sbr.rel (%p453) target = $region40
      $region39: #{mlp_3layer_forward.3} parent=27 // pred_region
        _
      $region40: #{mlp_3layer_forward.3} parent=27 // pred_fallthru
        _
    $region28: #{mlp_3layer_forward.3} parent=5 // pred_fallthru
      _
    %p456 = scmp.le.s32.totalorder 2, %s10
    // Predicated region
    $region41: #{mlp_3layer_forward.3} parent=5 // pred_check
      %p457 = pneg %p456
    $region42: #{mlp_3layer_forward.3} parent=5 // pred_check_branch
      %459 = sbr.rel (%p457) target = $region44
    $region43: #{mlp_3layer_forward.3} parent=5 // pred_region
      %s460 = ssub.s32 %s10, 2
      // Predicated region
      $region45: #{mlp_3layer_forward.3} parent=43 // pred_check
        %p461 = pneg %p102
      $region46: #{mlp_3layer_forward.3} parent=43 // pred_check_branch
        %463 = sbr.rel (%p461) target = $region48
      $region47: #{mlp_3layer_forward.3} parent=43 // pred_region
        %s464 = smul.u32 2, %s22
        %p465 = scmp.lt.s32.totalorder %s21, 1
        %s466 = scalar_select %p465, %s21, 1
        %p467 = scmp.lt.s32.totalorder %s464, 1
        %s468 = scalar_select %p467, %s464, 1
        %s469 = smul.addr %s466, 8
        %s470 = sadd.s32 %s468, %s469
        %s471 = smul.addr %s470, 4
        %s472 = scalar_lea.vmem %s2, %s471
      $region48: #{mlp_3layer_forward.3} parent=43 // pred_fallthru
        _
      // Predicated region
      $region49: #{mlp_3layer_forward.3} parent=43 // pred_check
        %p473 = pneg %p128
      $region50: #{mlp_3layer_forward.3} parent=43 // pred_check_branch
        %475 = sbr.rel (%p473) target = $region52
      $region51: #{mlp_3layer_forward.3} parent=43 // pred_region
        %p476 = scmp.lt.s32.totalorder %s21, 1
        %s477 = scalar_select %p476, %s21, 1
        %s478 = smul.addr %s477, 4
        %s479 = smul.addr %s478, 8
        %s480 = scalar_lea.vmem %s3, %s479
      $region52: #{mlp_3layer_forward.3} parent=43 // pred_fallthru
        _
    $region44: #{mlp_3layer_forward.3} parent=5 // pred_fallthru
      _
  $region6: #{mlp_3layer_forward.3} parent=0 // loop_footer
    %s14 = sadd.s32 1, %s10
  $region7: #{mlp_3layer_forward.3} parent=0 // loop_footer_branch
    %9 = sbr.rel target = $region3
  $region8: #{mlp_3layer_forward.3} parent=0 // loop_exit
    _

</llo_original>
